<compile_context>
chip_gen: v6e
topology: v6e:2x2x1
jax: 0.10.0
libtpu: 0.0.40
codegen_flags: <defaults>
</compile_context>

<pallas_src>
import functools

import jax
import jax.numpy as jnp
from jax.experimental import pallas as pl
from jax.experimental.pallas import tpu as pltpu


def _spectral_matmul_kernel(x_ref, w_ref, o_ref):
    """One (mode-tile, batch-tile) block of the spectral contraction.

    x_ref : (TM, TB, 2*Cin)      [xr | xi] stacked along the contraction axis
    w_ref : (TM, 2*Cin, 2*Cout)  per-mode block weight [[Wr, Wi], [-Wi, Wr]]
    o_ref : (TM, TB, 2*Cout)     [out_r | out_i] stacked along the lane axis

    Each mode is a single MXU matmul; TM <= 8 so the static unroll is cheap and
    stays on the plain 2-D dot lowering path.  Precision.HIGHEST keeps full f32
    accuracy (matches the torch.cfloat einsum).  On v6e/v7x, casting x/w to
    bfloat16 (f32 accumulation) would double MXU rate if the model tolerates it.
    """
    tm = x_ref.shape[0]
    for t in range(tm):  # static, small unroll
        o_ref[t] = jnp.dot(
            x_ref[t],
            w_ref[t],
            precision=jax.lax.Precision.HIGHEST,
            preferred_element_type=jnp.float32,
        ).astype(o_ref.dtype)


def _compl_mul1d_pallas(xcat, wblk):
    """Mode-batched real matmul: (M, B, 2Cin) x (M, 2Cin, 2Cout) -> (M, B, 2Cout)."""
    M, B, cin2 = xcat.shape
    cout2 = wblk.shape[2]

    # Batch tile: full B when small, else 128 rows (8-sublane aligned).
    tb = B if B <= 128 else 128
    # Mode tile: a few modes per grid step amortizes the ~0.35us/step pipeline
    # overhead while keeping double-buffered tiles far below v7x's VMEM budget.
    tm = M if M <= 8 else 8

    grid = (pl.cdiv(M, tm), pl.cdiv(B, tb))

    return pl.pallas_call(
        _spectral_matmul_kernel,
        out_shape=jax.ShapeDtypeStruct((M, B, cout2), jnp.float32),
        grid=grid,
        in_specs=[
            # Activations: new tile every grid step.
            pl.BlockSpec((tm, tb, cin2), lambda m, b: (m, b, 0)),
            # Weights: index_map independent of the (inner) batch axis, so the
            # weight tile stays VMEM-resident while batch tiles stream.
            pl.BlockSpec((tm, cin2, cout2), lambda m, b: (m, 0, 0)),
        ],
        out_specs=pl.BlockSpec((tm, tb, cout2), lambda m, b: (m, b, 0)),
        compiler_params=pltpu.CompilerParams(
            # Both grid axes are independent -> megacore/TC sharding on v7x.
            dimension_semantics=("parallel", "parallel"),
            vmem_limit_bytes=32 * 1024 * 1024,
        ),
    )(xcat, wblk)


@functools.partial(jax.jit, static_argnames=("modes",))
def spectral_conv1d(x, w_real, w_imag, *, modes):
    """Forward pass of SpectralConv1d.

    x       : (B, C_in, N) float32
    w_real  : (C_in, C_out, modes) float32
    w_imag  : (C_in, C_out, modes) float32
    returns : (B, C_out, N) float32
    """
    B, Cin, N = x.shape
    Cout = w_real.shape[1]
    n_freq = N // 2 + 1

    # rFFT along the spatial axis -> complex64 spectrum; keep first `modes`.
    x_ft = jnp.fft.rfft(x, axis=-1)[:, :, :modes]
    xr = jnp.real(x_ft).astype(jnp.float32)  # (B, Cin, M)
    xi = jnp.imag(x_ft).astype(jnp.float32)

    # LHS: (M, B, 2*Cin) with [xr | xi] stacked along the contraction axis.
    xcat = jnp.transpose(jnp.concatenate([xr, xi], axis=1), (2, 0, 1))

    # Block weight: (M, 2*Cin, 2*Cout) = [[Wr, Wi], [-Wi, Wr]] per mode, so one
    # real matmul yields both real and imaginary outputs.
    wr = jnp.transpose(w_real.astype(jnp.float32), (2, 0, 1))  # (M, Cin, Cout)
    wi = jnp.transpose(w_imag.astype(jnp.float32), (2, 0, 1))
    wblk = jnp.concatenate(
        [jnp.concatenate([wr, wi], axis=2),
         jnp.concatenate([-wi, wr], axis=2)],
        axis=1,
    )

    o = _compl_mul1d_pallas(xcat, wblk)  # (M, B, 2*Cout)

    out_r = jnp.transpose(o[:, :, :Cout], (1, 2, 0))  # (B, Cout, M)
    out_i = jnp.transpose(o[:, :, Cout:], (1, 2, 0))

    # Zero-pad the truncated spectrum up to n_freq in one shot
    # (no zeros-buffer + scatter read-modify-write pass).
    out_ft = jnp.pad(jax.lax.complex(out_r, out_i),
                     ((0, 0), (0, 0), (0, n_freq - modes)))

    return jnp.fft.irfft(out_ft, n=N, axis=-1)


def reference_spectral_conv1d(x, w_real, w_imag, *, modes):
    """Pure-JAX reference (mirrors the PyTorch module exactly)."""
    B, Cin, N = x.shape
    Cout = w_real.shape[1]
    n_freq = N // 2 + 1
    x_ft = jnp.fft.rfft(x, axis=-1)
    w = (w_real + 1j * w_imag).astype(jnp.complex64)
    out_modes = jnp.einsum("bix,iox->box", x_ft[:, :, :modes], w)
    out_ft = jnp.zeros((B, Cout, n_freq), dtype=jnp.complex64)
    out_ft = out_ft.at[:, :, :modes].set(out_modes)
    return jnp.fft.irfft(out_ft, n=N, axis=-1)


if __name__ == "__main__":
    # Small shapes consistent with the module's forward:
    batch, in_channels, out_channels, spatial, modes = 2, 4, 4, 16, 5

    key = jax.random.PRNGKey(0)
    kx, kwr, kwi = jax.random.split(key, 3)

    x = jax.random.normal(kx, (batch, in_channels, spatial), dtype=jnp.float32)

    # Deterministic param init mimicking torch.rand complex weights * scale
    scale = 1.0 / (in_channels * out_channels)
    w_real = scale * jax.random.uniform(
        kwr, (in_channels, out_channels, modes), dtype=jnp.float32
    )
    w_imag = scale * jax.random.uniform(
        kwi, (in_channels, out_channels, modes), dtype=jnp.float32
    )

    out = spectral_conv1d(x, w_real, w_imag, modes=modes)
    out = jax.block_until_ready(out)

    ref = reference_spectral_conv1d(x, w_real, w_imag, modes=modes)
    ref = jax.block_until_ready(ref)

    assert out.shape == (batch, out_channels, spatial), out.shape
    # Full-f32 MXU contraction (Precision.HIGHEST); small cushion for
    # summation-order differences vs. the XLA complex einsum.
    assert jnp.allclose(out, ref, atol=1e-4, rtol=1e-4), (
        float(jnp.max(jnp.abs(out - ref)))
    )

    print("KERNEL_OK")
</pallas_src>

<mosaic_0001>
module attributes {stable_mosaic.version = 11 : i64} {
  func.func @_spectral_matmul_kernel(%arg0: i32, %arg1: i32, %arg2: memref<5x2x8xf32, #tpu.memory_space<vmem>>, %arg3: memref<5x8x8xf32, #tpu.memory_space<vmem>>, %arg4: memref<5x2x8xf32, #tpu.memory_space<vmem>>) attributes {dimension_semantics = [#tpu.dimension_semantics<parallel>, #tpu.dimension_semantics<parallel>], iteration_bounds = array<i64: 1, 1>, scalar_prefetch = 0 : i64, scratch_operands = 0 : i64, tpu.core_type = #tpu.core_type<tc>, window_params = [{transform_indices = @transform_0, window_bounds = array<i64: 5, 2, 8>}, {transform_indices = @transform_1, window_bounds = array<i64: 5, 8, 8>}, {transform_indices = @transform_2, window_bounds = array<i64: 5, 2, 8>}]} {
    %c0 = arith.constant 0 : index
    %c0_0 = arith.constant 0 : index
    %c0_1 = arith.constant 0 : index
    %0 = vector.load %arg2[%c0, %c0_0, %c0_1] : memref<5x2x8xf32, #tpu.memory_space<vmem>>, vector<1x2x8xf32>
    %1 = vector.shape_cast %0 : vector<1x2x8xf32> to vector<2x8xf32>
    %c0_2 = arith.constant 0 : index
    %c0_3 = arith.constant 0 : index
    %c0_4 = arith.constant 0 : index
    %2 = vector.load %arg3[%c0_2, %c0_3, %c0_4] : memref<5x8x8xf32, #tpu.memory_space<vmem>>, vector<1x8x8xf32>
    %3 = vector.shape_cast %2 : vector<1x8x8xf32> to vector<8x8xf32>
    %cst = arith.constant dense<0.000000e+00> : vector<2x8xf32>
    %4 = tpu.matmul %1, %3, %cst {dimension_numbers = #tpu.dot_dimension_numbers<[1], [0], [0], [1], [0, 0, 1, 1], [], []>, precision = #tpu.contract_precision<fp32>} : vector<2x8xf32>, vector<8x8xf32>, vector<2x8xf32> -> vector<2x8xf32>
    %c0_5 = arith.constant 0 : index
    %c0_6 = arith.constant 0 : index
    %c0_7 = arith.constant 0 : index
    %5 = vector.load %arg4[%c0_5, %c0_6, %c0_7] : memref<5x2x8xf32, #tpu.memory_space<vmem>>, vector<1x2x8xf32>
    %6 = vector.shape_cast %5 : vector<1x2x8xf32> to vector<2x8xf32>
    %7 = vector.shape_cast %4 : vector<2x8xf32> to vector<1x2x8xf32>
    tpu.vector_store %arg4[%c0_5, %c0_6, %c0_7], %7 {strides = array<i32>} : memref<5x2x8xf32, #tpu.memory_space<vmem>>, vector<1x2x8xf32>,
    %c1 = arith.constant 1 : index
    %c0_8 = arith.constant 0 : index
    %c0_9 = arith.constant 0 : index
    %8 = vector.load %arg2[%c1, %c0_8, %c0_9] : memref<5x2x8xf32, #tpu.memory_space<vmem>>, vector<1x2x8xf32>
    %9 = vector.shape_cast %8 : vector<1x2x8xf32> to vector<2x8xf32>
    %c1_10 = arith.constant 1 : index
    %c0_11 = arith.constant 0 : index
    %c0_12 = arith.constant 0 : index
    %10 = vector.load %arg3[%c1_10, %c0_11, %c0_12] : memref<5x8x8xf32, #tpu.memory_space<vmem>>, vector<1x8x8xf32>
    %11 = vector.shape_cast %10 : vector<1x8x8xf32> to vector<8x8xf32>
    %cst_13 = arith.constant dense<0.000000e+00> : vector<2x8xf32>
    %12 = tpu.matmul %9, %11, %cst_13 {dimension_numbers = #tpu.dot_dimension_numbers<[1], [0], [0], [1], [0, 0, 1, 1], [], []>, precision = #tpu.contract_precision<fp32>} : vector<2x8xf32>, vector<8x8xf32>, vector<2x8xf32> -> vector<2x8xf32>
    %c1_14 = arith.constant 1 : index
    %c0_15 = arith.constant 0 : index
    %c0_16 = arith.constant 0 : index
    %13 = vector.load %arg4[%c1_14, %c0_15, %c0_16] : memref<5x2x8xf32, #tpu.memory_space<vmem>>, vector<1x2x8xf32>
    %14 = vector.shape_cast %13 : vector<1x2x8xf32> to vector<2x8xf32>
    %15 = vector.shape_cast %12 : vector<2x8xf32> to vector<1x2x8xf32>
    tpu.vector_store %arg4[%c1_14, %c0_15, %c0_16], %15 {strides = array<i32>} : memref<5x2x8xf32, #tpu.memory_space<vmem>>, vector<1x2x8xf32>,
    %c2 = arith.constant 2 : index
    %c0_17 = arith.constant 0 : index
    %c0_18 = arith.constant 0 : index
    %16 = vector.load %arg2[%c2, %c0_17, %c0_18] : memref<5x2x8xf32, #tpu.memory_space<vmem>>, vector<1x2x8xf32>
    %17 = vector.shape_cast %16 : vector<1x2x8xf32> to vector<2x8xf32>
    %c2_19 = arith.constant 2 : index
    %c0_20 = arith.constant 0 : index
    %c0_21 = arith.constant 0 : index
    %18 = vector.load %arg3[%c2_19, %c0_20, %c0_21] : memref<5x8x8xf32, #tpu.memory_space<vmem>>, vector<1x8x8xf32>
    %19 = vector.shape_cast %18 : vector<1x8x8xf32> to vector<8x8xf32>
    %cst_22 = arith.constant dense<0.000000e+00> : vector<2x8xf32>
    %20 = tpu.matmul %17, %19, %cst_22 {dimension_numbers = #tpu.dot_dimension_numbers<[1], [0], [0], [1], [0, 0, 1, 1], [], []>, precision = #tpu.contract_precision<fp32>} : vector<2x8xf32>, vector<8x8xf32>, vector<2x8xf32> -> vector<2x8xf32>
    %c2_23 = arith.constant 2 : index
    %c0_24 = arith.constant 0 : index
    %c0_25 = arith.constant 0 : index
    %21 = vector.load %arg4[%c2_23, %c0_24, %c0_25] : memref<5x2x8xf32, #tpu.memory_space<vmem>>, vector<1x2x8xf32>
    %22 = vector.shape_cast %21 : vector<1x2x8xf32> to vector<2x8xf32>
    %23 = vector.shape_cast %20 : vector<2x8xf32> to vector<1x2x8xf32>
    tpu.vector_store %arg4[%c2_23, %c0_24, %c0_25], %23 {strides = array<i32>} : memref<5x2x8xf32, #tpu.memory_space<vmem>>, vector<1x2x8xf32>,
    %c3 = arith.constant 3 : index
    %c0_26 = arith.constant 0 : index
    %c0_27 = arith.constant 0 : index
    %24 = vector.load %arg2[%c3, %c0_26, %c0_27] : memref<5x2x8xf32, #tpu.memory_space<vmem>>, vector<1x2x8xf32>
    %25 = vector.shape_cast %24 : vector<1x2x8xf32> to vector<2x8xf32>
    %c3_28 = arith.constant 3 : index
    %c0_29 = arith.constant 0 : index
    %c0_30 = arith.constant 0 : index
    %26 = vector.load %arg3[%c3_28, %c0_29, %c0_30] : memref<5x8x8xf32, #tpu.memory_space<vmem>>, vector<1x8x8xf32>
    %27 = vector.shape_cast %26 : vector<1x8x8xf32> to vector<8x8xf32>
    %cst_31 = arith.constant dense<0.000000e+00> : vector<2x8xf32>
    %28 = tpu.matmul %25, %27, %cst_31 {dimension_numbers = #tpu.dot_dimension_numbers<[1], [0], [0], [1], [0, 0, 1, 1], [], []>, precision = #tpu.contract_precision<fp32>} : vector<2x8xf32>, vector<8x8xf32>, vector<2x8xf32> -> vector<2x8xf32>
    %c3_32 = arith.constant 3 : index
    %c0_33 = arith.constant 0 : index
    %c0_34 = arith.constant 0 : index
    %29 = vector.load %arg4[%c3_32, %c0_33, %c0_34] : memref<5x2x8xf32, #tpu.memory_space<vmem>>, vector<1x2x8xf32>
    %30 = vector.shape_cast %29 : vector<1x2x8xf32> to vector<2x8xf32>
    %31 = vector.shape_cast %28 : vector<2x8xf32> to vector<1x2x8xf32>
    tpu.vector_store %arg4[%c3_32, %c0_33, %c0_34], %31 {strides = array<i32>} : memref<5x2x8xf32, #tpu.memory_space<vmem>>, vector<1x2x8xf32>,
    %c4 = arith.constant 4 : index
    %c0_35 = arith.constant 0 : index
    %c0_36 = arith.constant 0 : index
    %32 = vector.load %arg2[%c4, %c0_35, %c0_36] : memref<5x2x8xf32, #tpu.memory_space<vmem>>, vector<1x2x8xf32>
    %33 = vector.shape_cast %32 : vector<1x2x8xf32> to vector<2x8xf32>
    %c4_37 = arith.constant 4 : index
    %c0_38 = arith.constant 0 : index
    %c0_39 = arith.constant 0 : index
    %34 = vector.load %arg3[%c4_37, %c0_38, %c0_39] : memref<5x8x8xf32, #tpu.memory_space<vmem>>, vector<1x8x8xf32>
    %35 = vector.shape_cast %34 : vector<1x8x8xf32> to vector<8x8xf32>
    %cst_40 = arith.constant dense<0.000000e+00> : vector<2x8xf32>
    %36 = tpu.matmul %33, %35, %cst_40 {dimension_numbers = #tpu.dot_dimension_numbers<[1], [0], [0], [1], [0, 0, 1, 1], [], []>, precision = #tpu.contract_precision<fp32>} : vector<2x8xf32>, vector<8x8xf32>, vector<2x8xf32> -> vector<2x8xf32>
    %c4_41 = arith.constant 4 : index
    %c0_42 = arith.constant 0 : index
    %c0_43 = arith.constant 0 : index
    %37 = vector.load %arg4[%c4_41, %c0_42, %c0_43] : memref<5x2x8xf32, #tpu.memory_space<vmem>>, vector<1x2x8xf32>
    %38 = vector.shape_cast %37 : vector<1x2x8xf32> to vector<2x8xf32>
    %39 = vector.shape_cast %36 : vector<2x8xf32> to vector<1x2x8xf32>
    tpu.vector_store %arg4[%c4_41, %c0_42, %c0_43], %39 {strides = array<i32>} : memref<5x2x8xf32, #tpu.memory_space<vmem>>, vector<1x2x8xf32>,
    return
  }
  func.func @transform_0(%arg0: i32, %arg1: i32) -> (i32, i32, i32) {
    %c0_i32 = arith.constant 0 : i32
    %c0_i32_0 = arith.constant 0 : i32
    return %arg0, %arg1, %c0_i32 : i32, i32, i32
  }
  func.func @transform_1(%arg0: i32, %arg1: i32) -> (i32, i32, i32) {
    %c0_i32 = arith.constant 0 : i32
    %c0_i32_0 = arith.constant 0 : i32
    %c0_i32_1 = arith.constant 0 : i32
    return %arg0, %c0_i32, %c0_i32_0 : i32, i32, i32
  }
  func.func @transform_2(%arg0: i32, %arg1: i32) -> (i32, i32, i32) {
    %c0_i32 = arith.constant 0 : i32
    %c0_i32_0 = arith.constant 0 : i32
    return %arg0, %arg1, %c0_i32 : i32, i32, i32
  }
}

</mosaic_0001>

<llo_original>
// kernel: reverse.1
$region0: #{reverse.1}
  #allocation0 [shape = 's32[1]{0}', space=sflag, size = 0x4, scoped, tag = 'scoped memory for reverse.1']
  %s0 = inlined_call_operand.vmem [shape: f32[2,4,7], index: 0, kind: input, shape index: {}]
  %s1 = inlined_call_operand.vmem [shape: f32[2,4,7], index: 1, kind: output, shape index: {}]
  %s2 = scalar_lea.vmem %s0, 12
  %v3 = vld [vmem:[%s2] sm:$0x3]
  %4 = vst [vmem:[%s1] sm:$0x3] %v3
  %s5 = scalar_lea.vmem %s0, 10
  %v6 = vld [vmem:[%s5] sm:$0x3]
  %s7 = scalar_lea.vmem %s1, 2
  %8 = vst [vmem:[%s7] sm:$0x3] %v6
  %s9 = scalar_lea.vmem %s0, 8
  %v10 = vld [vmem:[%s9] sm:$0x3]
  %s11 = scalar_lea.vmem %s1, 4
  %12 = vst [vmem:[%s11] sm:$0x3] %v10
  %s13 = scalar_lea.vmem %s0, 6
  %v14 = vld [vmem:[%s13] sm:$0x3]
  %s15 = scalar_lea.vmem %s1, 6
  %16 = vst [vmem:[%s15] sm:$0x3] %v14
  %s17 = scalar_lea.vmem %s0, 4
  %v18 = vld [vmem:[%s17] sm:$0x3]
  %s19 = scalar_lea.vmem %s1, 8
  %20 = vst [vmem:[%s19] sm:$0x3] %v18
  %s21 = scalar_lea.vmem %s0, 2
  %v22 = vld [vmem:[%s21] sm:$0x3]
  %s23 = scalar_lea.vmem %s1, 10
  %24 = vst [vmem:[%s23] sm:$0x3] %v22
  %v25 = vld [vmem:[%s0] sm:$0x3]
  %s26 = scalar_lea.vmem %s1, 12
  %27 = vst [vmem:[%s26] sm:$0x3] %v25

// kernel: spectral_conv1d.1
$region0: #{spectral_conv1d.1}
  #allocation0 [shape = 'u32[]', space=smem, size = 0x4, offset = 0x4, fixed_abs, tag = 'smem constant byte address 0x4 - core index']
  #allocation1 [shape = 'u32[144,128]{1,0:T(1,128)}', space=vmem, size = 0x12000, scoped, tag = 'internal scratch']
  %s0 = inlined_call_operand.vmem [shape: f32[5,2,8], index: 0, kind: input, shape index: {}]
  %s1 = inlined_call_operand.vmem [shape: f32[5,8,8], index: 1, kind: input, shape index: {}]
  %s2 = inlined_call_operand.vmem [shape: f32[5,2,8], index: 2, kind: output, shape index: {}]
  %s3 = sld [smem:[#allocation0]]
  $region18: #{spectral_conv1d.1} parent=0
    _
  %s5 = ssub.s32 1, %s3
  %s6 = scalar_select 0, %s5, %s3
  // Predicated region
  $region2: #{spectral_conv1d.1} parent=0 // pred_check
    _
  $region3: #{spectral_conv1d.1} parent=0 // pred_check_branch
    %8 = sbr.rel (0) target = $region5
  $region4: #{spectral_conv1d.1} parent=0 // pred_region
    _
  $region5: #{spectral_conv1d.1} parent=0 // pred_fallthru
    _
  // Predicated region
  $region6: #{spectral_conv1d.1} parent=0 // pred_check
    _
  $region7: #{spectral_conv1d.1} parent=0 // pred_check_branch
    %10 = sbr.rel (0) target = $region9
  $region8: #{spectral_conv1d.1} parent=0 // pred_region
    _
  $region9: #{spectral_conv1d.1} parent=0 // pred_fallthru
    _
  %v11 = vld [vmem:[%s0] sm:$0x3]
  %v12 = vld [vmem:[%s1] sm:$0xff]
  %vm13 = vcmask 64512
  %v15 = vsel %vm13, %v11, 0
  %17 = vmatprep.subr.mxu0 0.0
  %18 = vmatpush1.msra.mxu0 0.0
  %19 = vmatprep.subr.mxu0 0.0
  %20 = vmatpush1.msra.mxu0 0.0
  %21 = vmatprep.subr.mxu0 0.0
  %22 = vmatpush1.msra.mxu0 0.0
  %23 = vmatprep.subr.mxu0 0.0
  %24 = vmatpush1.msra.mxu0 0.0
  %25 = vmatprep.subr.mxu0 0.0
  %26 = vmatpush1.msra.mxu0 0.0
  %27 = vmatprep.subr.mxu0 0.0
  %28 = vmatpush1.msra.mxu0 0.0
  %29 = vmatprep.subr.mxu0 0.0
  %30 = vmatpush1.msra.mxu0 0.0
  %31 = vmatprep.subr.mxu0 0.0
  %32 = vmatpush1.msra.mxu0 0.0
  %33 = vmatprep.subr.mxu0 0.0
  %34 = vmatpush1.msra.mxu0 0.0
  %35 = vmatprep.subr.mxu0 0.0
  %36 = vmatpush1.msra.mxu0 0.0
  %37 = vmatprep.subr.mxu0 0.0
  %38 = vmatpush1.msra.mxu0 0.0
  %39 = vmatprep.subr.mxu0 0.0
  %40 = vmatpush1.msra.mxu0 0.0
  %41 = vmatprep.subr.mxu0 0.0
  %42 = vmatpush1.msra.mxu0 0.0
  %43 = vmatprep.subr.mxu0 0.0
  %44 = vmatpush1.msra.mxu0 0.0
  %45 = vmatprep.subr.mxu0 0.0
  %46 = vmatpush1.msra.mxu0 0.0
  %47 = vmatprep.subr.mxu0 0.0
  %v48 = vand.u32 %v12, 4294901760
  %49 = vmatpush1.msra.mxu0 %v48
  %50 = vmatprep.subr.mxu0 0.0
  %51 = vmatpush2.msra.mxu0 0.0
  %52 = vmatprep.subr.mxu0 0.0
  %53 = vmatpush2.msra.mxu0 0.0
  %54 = vmatprep.subr.mxu0 0.0
  %55 = vmatpush2.msra.mxu0 0.0
  %56 = vmatprep.subr.mxu0 0.0
  %57 = vmatpush2.msra.mxu0 0.0
  %58 = vmatprep.subr.mxu0 0.0
  %59 = vmatpush2.msra.mxu0 0.0
  %60 = vmatprep.subr.mxu0 0.0
  %61 = vmatpush2.msra.mxu0 0.0
  %62 = vmatprep.subr.mxu0 0.0
  %63 = vmatpush2.msra.mxu0 0.0
  %64 = vmatprep.subr.mxu0 0.0
  %65 = vmatpush2.msra.mxu0 0.0
  %66 = vmatprep.subr.mxu0 0.0
  %67 = vmatpush2.msra.mxu0 0.0
  %68 = vmatprep.subr.mxu0 0.0
  %69 = vmatpush2.msra.mxu0 0.0
  %70 = vmatprep.subr.mxu0 0.0
  %71 = vmatpush2.msra.mxu0 0.0
  %72 = vmatprep.subr.mxu0 0.0
  %73 = vmatpush2.msra.mxu0 0.0
  %74 = vmatprep.subr.mxu0 0.0
  %75 = vmatpush2.msra.mxu0 0.0
  %76 = vmatprep.subr.mxu0 0.0
  %77 = vmatpush2.msra.mxu0 0.0
  %78 = vmatprep.subr.mxu0 0.0
  %79 = vmatpush2.msra.mxu0 0.0
  %80 = vmatprep.subr.mxu0 0.0
  %81 = vmatpush2.msra.mxu0 0.0
  %82 = vmatprep.mubr.f32.mxu0 0.0
  %v83 = vand.u32 %v15, 4294901760
  %v84 = vsub.f32 %v15, %v83
  %v85 = vand.u32 %v84, 4294901760
  %v86 = vsub.f32 %v84, %v85
  %v87 = vand.u32 %v86, 4294901760
  %88 = vmatmul.mubr.f32.gmra.mxu0 %v87
  %v89 = vpop.f32.mrf.mxu0
  %v90 = vadd.f32 0.0, %v89
  %v91 = vpop.f32.mrf.mxu0
  %92 = vdwg.mxu0
  %93 = vmatprep.subr.mxu0 0.0
  %94 = vmatpush1.msra.mxu0 0.0
  %95 = vmatprep.subr.mxu0 0.0
  %96 = vmatpush1.msra.mxu0 0.0
  %97 = vmatprep.subr.mxu0 0.0
  %98 = vmatpush1.msra.mxu0 0.0
  %99 = vmatprep.subr.mxu0 0.0
  %100 = vmatpush1.msra.mxu0 0.0
  %101 = vmatprep.subr.mxu0 0.0
  %102 = vmatpush1.msra.mxu0 0.0
  %103 = vmatprep.subr.mxu0 0.0
  %104 = vmatpush1.msra.mxu0 0.0
  %105 = vmatprep.subr.mxu0 0.0
  %106 = vmatpush1.msra.mxu0 0.0
  %107 = vmatprep.subr.mxu0 0.0
  %108 = vmatpush1.msra.mxu0 0.0
  %109 = vmatprep.subr.mxu0 0.0
  %110 = vmatpush1.msra.mxu0 0.0
  %111 = vmatprep.subr.mxu0 0.0
  %112 = vmatpush1.msra.mxu0 0.0
  %113 = vmatprep.subr.mxu0 0.0
  %114 = vmatpush1.msra.mxu0 0.0
  %115 = vmatprep.subr.mxu0 0.0
  %116 = vmatpush1.msra.mxu0 0.0
  %117 = vmatprep.subr.mxu0 0.0
  %118 = vmatpush1.msra.mxu0 0.0
  %119 = vmatprep.subr.mxu0 0.0
  %120 = vmatpush1.msra.mxu0 0.0
  %121 = vmatprep.subr.mxu0 0.0
  %122 = vmatpush1.msra.mxu0 0.0
  %123 = vmatprep.subr.mxu0 0.0
  %v124 = vand.u32 %v12, 4294901760
  %v125 = vsub.f32 %v12, %v124
  %v126 = vand.u32 %v125, 4294901760
  %v127 = vsub.f32 %v125, %v126
  %v128 = vand.u32 %v127, 4294901760
  %129 = vmatpush1.msra.mxu0 %v128
  %130 = vmatprep.subr.mxu0 0.0
  %131 = vmatpush2.msra.mxu0 0.0
  %132 = vmatprep.subr.mxu0 0.0
  %133 = vmatpush2.msra.mxu0 0.0
  %134 = vmatprep.subr.mxu0 0.0
  %135 = vmatpush2.msra.mxu0 0.0
  %136 = vmatprep.subr.mxu0 0.0
  %137 = vmatpush2.msra.mxu0 0.0
  %138 = vmatprep.subr.mxu0 0.0
  %139 = vmatpush2.msra.mxu0 0.0
  %140 = vmatprep.subr.mxu0 0.0
  %141 = vmatpush2.msra.mxu0 0.0
  %142 = vmatprep.subr.mxu0 0.0
  %143 = vmatpush2.msra.mxu0 0.0
  %144 = vmatprep.subr.mxu0 0.0
  %145 = vmatpush2.msra.mxu0 0.0
  %146 = vmatprep.subr.mxu0 0.0
  %147 = vmatpush2.msra.mxu0 0.0
  %148 = vmatprep.subr.mxu0 0.0
  %149 = vmatpush2.msra.mxu0 0.0
  %150 = vmatprep.subr.mxu0 0.0
  %151 = vmatpush2.msra.mxu0 0.0
  %152 = vmatprep.subr.mxu0 0.0
  %153 = vmatpush2.msra.mxu0 0.0
  %154 = vmatprep.subr.mxu0 0.0
  %155 = vmatpush2.msra.mxu0 0.0
  %156 = vmatprep.subr.mxu0 0.0
  %157 = vmatpush2.msra.mxu0 0.0
  %158 = vmatprep.subr.mxu0 0.0
  %159 = vmatpush2.msra.mxu0 0.0
  %160 = vmatprep.subr.mxu0 0.0
  %161 = vmatpush2.msra.mxu0 0.0
  %162 = vmatprep.mubr.f32.mxu0 0.0
  %v163 = vand.u32 %v15, 4294901760
  %164 = vmatmul.mubr.f32.gmra.mxu0 %v163
  %v165 = vpop.f32.mrf.mxu0
  %v166 = vadd.f32 %v90, %v165
  %v167 = vpop.f32.mrf.mxu0
  %168 = vdwg.mxu0
  %169 = vmatprep.subr.mxu0 0.0
  %170 = vmatpush1.msra.mxu0 0.0
  %171 = vmatprep.subr.mxu0 0.0
  %172 = vmatpush1.msra.mxu0 0.0
  %173 = vmatprep.subr.mxu0 0.0
  %174 = vmatpush1.msra.mxu0 0.0
  %175 = vmatprep.subr.mxu0 0.0
  %176 = vmatpush1.msra.mxu0 0.0
  %177 = vmatprep.subr.mxu0 0.0
  %178 = vmatpush1.msra.mxu0 0.0
  %179 = vmatprep.subr.mxu0 0.0
  %180 = vmatpush1.msra.mxu0 0.0
  %181 = vmatprep.subr.mxu0 0.0
  %182 = vmatpush1.msra.mxu0 0.0
  %183 = vmatprep.subr.mxu0 0.0
  %184 = vmatpush1.msra.mxu0 0.0
  %185 = vmatprep.subr.mxu0 0.0
  %186 = vmatpush1.msra.mxu0 0.0
  %187 = vmatprep.subr.mxu0 0.0
  %188 = vmatpush1.msra.mxu0 0.0
  %189 = vmatprep.subr.mxu0 0.0
  %190 = vmatpush1.msra.mxu0 0.0
  %191 = vmatprep.subr.mxu0 0.0
  %192 = vmatpush1.msra.mxu0 0.0
  %193 = vmatprep.subr.mxu0 0.0
  %194 = vmatpush1.msra.mxu0 0.0
  %195 = vmatprep.subr.mxu0 0.0
  %196 = vmatpush1.msra.mxu0 0.0
  %197 = vmatprep.subr.mxu0 0.0
  %198 = vmatpush1.msra.mxu0 0.0
  %199 = vmatprep.subr.mxu0 0.0
  %v200 = vand.u32 %v12, 4294901760
  %v201 = vsub.f32 %v12, %v200
  %202 = vmatpush1.msra.mxu0 %v201
  %203 = vmatprep.subr.mxu0 0.0
  %204 = vmatpush2.msra.mxu0 0.0
  %205 = vmatprep.subr.mxu0 0.0
  %206 = vmatpush2.msra.mxu0 0.0
  %207 = vmatprep.subr.mxu0 0.0
  %208 = vmatpush2.msra.mxu0 0.0
  %209 = vmatprep.subr.mxu0 0.0
  %210 = vmatpush2.msra.mxu0 0.0
  %211 = vmatprep.subr.mxu0 0.0
  %212 = vmatpush2.msra.mxu0 0.0
  %213 = vmatprep.subr.mxu0 0.0
  %214 = vmatpush2.msra.mxu0 0.0
  %215 = vmatprep.subr.mxu0 0.0
  %216 = vmatpush2.msra.mxu0 0.0
  %217 = vmatprep.subr.mxu0 0.0
  %218 = vmatpush2.msra.mxu0 0.0
  %219 = vmatprep.subr.mxu0 0.0
  %220 = vmatpush2.msra.mxu0 0.0
  %221 = vmatprep.subr.mxu0 0.0
  %222 = vmatpush2.msra.mxu0 0.0
  %223 = vmatprep.subr.mxu0 0.0
  %224 = vmatpush2.msra.mxu0 0.0
  %225 = vmatprep.subr.mxu0 0.0
  %226 = vmatpush2.msra.mxu0 0.0
  %227 = vmatprep.subr.mxu0 0.0
  %228 = vmatpush2.msra.mxu0 0.0
  %229 = vmatprep.subr.mxu0 0.0
  %230 = vmatpush2.msra.mxu0 0.0
  %231 = vmatprep.subr.mxu0 0.0
  %232 = vmatpush2.msra.mxu0 0.0
  %233 = vmatprep.subr.mxu0 0.0
  %234 = vmatpush2.msra.mxu0 0.0
  %235 = vmatprep.mubr.f32.mxu0 0.0
  %v236 = vand.u32 %v15, 4294901760
  %v237 = vsub.f32 %v15, %v236
  %238 = vmatmul.mubr.f32.gmra.mxu0 %v237
  %v239 = vpop.f32.mrf.mxu0
  %v240 = vadd.f32 %v166, %v239
  %v241 = vpop.f32.mrf.mxu0
  %242 = vdwg.mxu0
  %243 = vmatprep.subr.mxu0 0.0
  %244 = vmatpush1.msra.mxu0 0.0
  %245 = vmatprep.subr.mxu0 0.0
  %246 = vmatpush1.msra.mxu0 0.0
  %247 = vmatprep.subr.mxu0 0.0
  %248 = vmatpush1.msra.mxu0 0.0
  %249 = vmatprep.subr.mxu0 0.0
  %250 = vmatpush1.msra.mxu0 0.0
  %251 = vmatprep.subr.mxu0 0.0
  %252 = vmatpush1.msra.mxu0 0.0
  %253 = vmatprep.subr.mxu0 0.0
  %254 = vmatpush1.msra.mxu0 0.0
  %255 = vmatprep.subr.mxu0 0.0
  %256 = vmatpush1.msra.mxu0 0.0
  %257 = vmatprep.subr.mxu0 0.0
  %258 = vmatpush1.msra.mxu0 0.0
  %259 = vmatprep.subr.mxu0 0.0
  %260 = vmatpush1.msra.mxu0 0.0
  %261 = vmatprep.subr.mxu0 0.0
  %262 = vmatpush1.msra.mxu0 0.0
  %263 = vmatprep.subr.mxu0 0.0
  %264 = vmatpush1.msra.mxu0 0.0
  %265 = vmatprep.subr.mxu0 0.0
  %266 = vmatpush1.msra.mxu0 0.0
  %267 = vmatprep.subr.mxu0 0.0
  %268 = vmatpush1.msra.mxu0 0.0
  %269 = vmatprep.subr.mxu0 0.0
  %270 = vmatpush1.msra.mxu0 0.0
  %271 = vmatprep.subr.mxu0 0.0
  %272 = vmatpush1.msra.mxu0 0.0
  %273 = vmatprep.subr.mxu0 0.0
  %v274 = vand.u32 %v12, 4294901760
  %275 = vmatpush1.msra.mxu0 %v274
  %276 = vmatprep.subr.mxu0 0.0
  %277 = vmatpush2.msra.mxu0 0.0
  %278 = vmatprep.subr.mxu0 0.0
  %279 = vmatpush2.msra.mxu0 0.0
  %280 = vmatprep.subr.mxu0 0.0
  %281 = vmatpush2.msra.mxu0 0.0
  %282 = vmatprep.subr.mxu0 0.0
  %283 = vmatpush2.msra.mxu0 0.0
  %284 = vmatprep.subr.mxu0 0.0
  %285 = vmatpush2.msra.mxu0 0.0
  %286 = vmatprep.subr.mxu0 0.0
  %287 = vmatpush2.msra.mxu0 0.0
  %288 = vmatprep.subr.mxu0 0.0
  %289 = vmatpush2.msra.mxu0 0.0
  %290 = vmatprep.subr.mxu0 0.0
  %291 = vmatpush2.msra.mxu0 0.0
  %292 = vmatprep.subr.mxu0 0.0
  %293 = vmatpush2.msra.mxu0 0.0
  %294 = vmatprep.subr.mxu0 0.0
  %295 = vmatpush2.msra.mxu0 0.0
  %296 = vmatprep.subr.mxu0 0.0
  %297 = vmatpush2.msra.mxu0 0.0
  %298 = vmatprep.subr.mxu0 0.0
  %299 = vmatpush2.msra.mxu0 0.0
  %300 = vmatprep.subr.mxu0 0.0
  %301 = vmatpush2.msra.mxu0 0.0
  %302 = vmatprep.subr.mxu0 0.0
  %303 = vmatpush2.msra.mxu0 0.0
  %304 = vmatprep.subr.mxu0 0.0
  %305 = vmatpush2.msra.mxu0 0.0
  %306 = vmatprep.subr.mxu0 0.0
  %307 = vmatpush2.msra.mxu0 0.0
  %308 = vmatprep.mubr.f32.mxu0 0.0
  %v309 = vand.u32 %v15, 4294901760
  %v310 = vsub.f32 %v15, %v309
  %v311 = vand.u32 %v310, 4294901760
  %312 = vmatmul.mubr.f32.gmra.mxu0 %v311
  %v313 = vpop.f32.mrf.mxu0
  %v314 = vadd.f32 %v240, %v313
  %v315 = vpop.f32.mrf.mxu0
  %316 = vdwg.mxu0
  %317 = vmatprep.subr.mxu0 0.0
  %318 = vmatpush1.msra.mxu0 0.0
  %319 = vmatprep.subr.mxu0 0.0
  %320 = vmatpush1.msra.mxu0 0.0
  %321 = vmatprep.subr.mxu0 0.0
  %322 = vmatpush1.msra.mxu0 0.0
  %323 = vmatprep.subr.mxu0 0.0
  %324 = vmatpush1.msra.mxu0 0.0
  %325 = vmatprep.subr.mxu0 0.0
  %326 = vmatpush1.msra.mxu0 0.0
  %327 = vmatprep.subr.mxu0 0.0
  %328 = vmatpush1.msra.mxu0 0.0
  %329 = vmatprep.subr.mxu0 0.0
  %330 = vmatpush1.msra.mxu0 0.0
  %331 = vmatprep.subr.mxu0 0.0
  %332 = vmatpush1.msra.mxu0 0.0
  %333 = vmatprep.subr.mxu0 0.0
  %334 = vmatpush1.msra.mxu0 0.0
  %335 = vmatprep.subr.mxu0 0.0
  %336 = vmatpush1.msra.mxu0 0.0
  %337 = vmatprep.subr.mxu0 0.0
  %338 = vmatpush1.msra.mxu0 0.0
  %339 = vmatprep.subr.mxu0 0.0
  %340 = vmatpush1.msra.mxu0 0.0
  %341 = vmatprep.subr.mxu0 0.0
  %342 = vmatpush1.msra.mxu0 0.0
  %343 = vmatprep.subr.mxu0 0.0
  %344 = vmatpush1.msra.mxu0 0.0
  %345 = vmatprep.subr.mxu0 0.0
  %346 = vmatpush1.msra.mxu0 0.0
  %347 = vmatprep.subr.mxu0 0.0
  %v348 = vand.u32 %v12, 4294901760
  %v349 = vsub.f32 %v12, %v348
  %v350 = vand.u32 %v349, 4294901760
  %351 = vmatpush1.msra.mxu0 %v350
  %352 = vmatprep.subr.mxu0 0.0
  %353 = vmatpush2.msra.mxu0 0.0
  %354 = vmatprep.subr.mxu0 0.0
  %355 = vmatpush2.msra.mxu0 0.0
  %356 = vmatprep.subr.mxu0 0.0
  %357 = vmatpush2.msra.mxu0 0.0
  %358 = vmatprep.subr.mxu0 0.0
  %359 = vmatpush2.msra.mxu0 0.0
  %360 = vmatprep.subr.mxu0 0.0
  %361 = vmatpush2.msra.mxu0 0.0
  %362 = vmatprep.subr.mxu0 0.0
  %363 = vmatpush2.msra.mxu0 0.0
  %364 = vmatprep.subr.mxu0 0.0
  %365 = vmatpush2.msra.mxu0 0.0
  %366 = vmatprep.subr.mxu0 0.0
  %367 = vmatpush2.msra.mxu0 0.0
  %368 = vmatprep.subr.mxu0 0.0
  %369 = vmatpush2.msra.mxu0 0.0
  %370 = vmatprep.subr.mxu0 0.0
  %371 = vmatpush2.msra.mxu0 0.0
  %372 = vmatprep.subr.mxu0 0.0
  %373 = vmatpush2.msra.mxu0 0.0
  %374 = vmatprep.subr.mxu0 0.0
  %375 = vmatpush2.msra.mxu0 0.0
  %376 = vmatprep.subr.mxu0 0.0
  %377 = vmatpush2.msra.mxu0 0.0
  %378 = vmatprep.subr.mxu0 0.0
  %379 = vmatpush2.msra.mxu0 0.0
  %380 = vmatprep.subr.mxu0 0.0
  %381 = vmatpush2.msra.mxu0 0.0
  %382 = vmatprep.subr.mxu0 0.0
  %383 = vmatpush2.msra.mxu0 0.0
  %384 = vmatprep.mubr.f32.mxu0 0.0
  %v385 = vand.u32 %v15, 4294901760
  %386 = vmatmul.mubr.f32.gmra.mxu0 %v385
  %v387 = vpop.f32.mrf.mxu0
  %v388 = vadd.f32 %v314, %v387
  %v389 = vpop.f32.mrf.mxu0
  %390 = vdwg.mxu0
  %391 = vmatprep.subr.mxu0 0.0
  %392 = vmatpush1.msra.mxu0 0.0
  %393 = vmatprep.subr.mxu0 0.0
  %394 = vmatpush1.msra.mxu0 0.0
  %395 = vmatprep.subr.mxu0 0.0
  %396 = vmatpush1.msra.mxu0 0.0
  %397 = vmatprep.subr.mxu0 0.0
  %398 = vmatpush1.msra.mxu0 0.0
  %399 = vmatprep.subr.mxu0 0.0
  %400 = vmatpush1.msra.mxu0 0.0
  %401 = vmatprep.subr.mxu0 0.0
  %402 = vmatpush1.msra.mxu0 0.0
  %403 = vmatprep.subr.mxu0 0.0
  %404 = vmatpush1.msra.mxu0 0.0
  %405 = vmatprep.subr.mxu0 0.0
  %406 = vmatpush1.msra.mxu0 0.0
  %407 = vmatprep.subr.mxu0 0.0
  %408 = vmatpush1.msra.mxu0 0.0
  %409 = vmatprep.subr.mxu0 0.0
  %410 = vmatpush1.msra.mxu0 0.0
  %411 = vmatprep.subr.mxu0 0.0
  %412 = vmatpush1.msra.mxu0 0.0
  %413 = vmatprep.subr.mxu0 0.0
  %414 = vmatpush1.msra.mxu0 0.0
  %415 = vmatprep.subr.mxu0 0.0
  %416 = vmatpush1.msra.mxu0 0.0
  %417 = vmatprep.subr.mxu0 0.0
  %418 = vmatpush1.msra.mxu0 0.0
  %419 = vmatprep.subr.mxu0 0.0
  %420 = vmatpush1.msra.mxu0 0.0
  %421 = vmatprep.subr.mxu0 0.0
  %v422 = vand.u32 %v12, 4294901760
  %423 = vmatpush1.msra.mxu0 %v422
  %424 = vmatprep.subr.mxu0 0.0
  %425 = vmatpush2.msra.mxu0 0.0
  %426 = vmatprep.subr.mxu0 0.0
  %427 = vmatpush2.msra.mxu0 0.0
  %428 = vmatprep.subr.mxu0 0.0
  %429 = vmatpush2.msra.mxu0 0.0
  %430 = vmatprep.subr.mxu0 0.0
  %431 = vmatpush2.msra.mxu0 0.0
  %432 = vmatprep.subr.mxu0 0.0
  %433 = vmatpush2.msra.mxu0 0.0
  %434 = vmatprep.subr.mxu0 0.0
  %435 = vmatpush2.msra.mxu0 0.0
  %436 = vmatprep.subr.mxu0 0.0
  %437 = vmatpush2.msra.mxu0 0.0
  %438 = vmatprep.subr.mxu0 0.0
  %439 = vmatpush2.msra.mxu0 0.0
  %440 = vmatprep.subr.mxu0 0.0
  %441 = vmatpush2.msra.mxu0 0.0
  %442 = vmatprep.subr.mxu0 0.0
  %443 = vmatpush2.msra.mxu0 0.0
  %444 = vmatprep.subr.mxu0 0.0
  %445 = vmatpush2.msra.mxu0 0.0
  %446 = vmatprep.subr.mxu0 0.0
  %447 = vmatpush2.msra.mxu0 0.0
  %448 = vmatprep.subr.mxu0 0.0
  %449 = vmatpush2.msra.mxu0 0.0
  %450 = vmatprep.subr.mxu0 0.0
  %451 = vmatpush2.msra.mxu0 0.0
  %452 = vmatprep.subr.mxu0 0.0
  %453 = vmatpush2.msra.mxu0 0.0
  %454 = vmatprep.subr.mxu0 0.0
  %455 = vmatpush2.msra.mxu0 0.0
  %456 = vmatprep.mubr.f32.mxu0 0.0
  %v457 = vand.u32 %v15, 4294901760
  %458 = vmatmul.mubr.f32.gmra.mxu0 %v457
  %v459 = vpop.f32.mrf.mxu0
  %v460 = vadd.f32 %v388, %v459
  %v461 = vpop.f32.mrf.mxu0
  %462 = vdwg.mxu0
  %vm463 = vcmask 58368
  %464 = vst.msk [vmem:[%s2] sm:$0x3] %vm463, %v460
  %s465 = scalar_lea.vmem %s0, 2
  %v466 = vld [vmem:[%s465] sm:$0x3]
  %s467 = scalar_lea.vmem %s1, 8
  %v468 = vld [vmem:[%s467] sm:$0xff]
  %v470 = vsel %vm13, %v466, 0
  %472 = vmatprep.subr.mxu0 0.0
  %473 = vmatpush1.msra.mxu0 0.0
  %474 = vmatprep.subr.mxu0 0.0
  %475 = vmatpush1.msra.mxu0 0.0
  %476 = vmatprep.subr.mxu0 0.0
  %477 = vmatpush1.msra.mxu0 0.0
  %478 = vmatprep.subr.mxu0 0.0
  %479 = vmatpush1.msra.mxu0 0.0
  %480 = vmatprep.subr.mxu0 0.0
  %481 = vmatpush1.msra.mxu0 0.0
  %482 = vmatprep.subr.mxu0 0.0
  %483 = vmatpush1.msra.mxu0 0.0
  %484 = vmatprep.subr.mxu0 0.0
  %485 = vmatpush1.msra.mxu0 0.0
  %486 = vmatprep.subr.mxu0 0.0
  %487 = vmatpush1.msra.mxu0 0.0
  %488 = vmatprep.subr.mxu0 0.0
  %489 = vmatpush1.msra.mxu0 0.0
  %490 = vmatprep.subr.mxu0 0.0
  %491 = vmatpush1.msra.mxu0 0.0
  %492 = vmatprep.subr.mxu0 0.0
  %493 = vmatpush1.msra.mxu0 0.0
  %494 = vmatprep.subr.mxu0 0.0
  %495 = vmatpush1.msra.mxu0 0.0
  %496 = vmatprep.subr.mxu0 0.0
  %497 = vmatpush1.msra.mxu0 0.0
  %498 = vmatprep.subr.mxu0 0.0
  %499 = vmatpush1.msra.mxu0 0.0
  %500 = vmatprep.subr.mxu0 0.0
  %501 = vmatpush1.msra.mxu0 0.0
  %502 = vmatprep.subr.mxu0 0.0
  %v503 = vand.u32 %v468, 4294901760
  %504 = vmatpush1.msra.mxu0 %v503
  %505 = vmatprep.subr.mxu0 0.0
  %506 = vmatpush2.msra.mxu0 0.0
  %507 = vmatprep.subr.mxu0 0.0
  %508 = vmatpush2.msra.mxu0 0.0
  %509 = vmatprep.subr.mxu0 0.0
  %510 = vmatpush2.msra.mxu0 0.0
  %511 = vmatprep.subr.mxu0 0.0
  %512 = vmatpush2.msra.mxu0 0.0
  %513 = vmatprep.subr.mxu0 0.0
  %514 = vmatpush2.msra.mxu0 0.0
  %515 = vmatprep.subr.mxu0 0.0
  %516 = vmatpush2.msra.mxu0 0.0
  %517 = vmatprep.subr.mxu0 0.0
  %518 = vmatpush2.msra.mxu0 0.0
  %519 = vmatprep.subr.mxu0 0.0
  %520 = vmatpush2.msra.mxu0 0.0
  %521 = vmatprep.subr.mxu0 0.0
  %522 = vmatpush2.msra.mxu0 0.0
  %523 = vmatprep.subr.mxu0 0.0
  %524 = vmatpush2.msra.mxu0 0.0
  %525 = vmatprep.subr.mxu0 0.0
  %526 = vmatpush2.msra.mxu0 0.0
  %527 = vmatprep.subr.mxu0 0.0
  %528 = vmatpush2.msra.mxu0 0.0
  %529 = vmatprep.subr.mxu0 0.0
  %530 = vmatpush2.msra.mxu0 0.0
  %531 = vmatprep.subr.mxu0 0.0
  %532 = vmatpush2.msra.mxu0 0.0
  %533 = vmatprep.subr.mxu0 0.0
  %534 = vmatpush2.msra.mxu0 0.0
  %535 = vmatprep.subr.mxu0 0.0
  %536 = vmatpush2.msra.mxu0 0.0
  %537 = vmatprep.mubr.f32.mxu0 0.0
  %v538 = vand.u32 %v470, 4294901760
  %v539 = vsub.f32 %v470, %v538
  %v540 = vand.u32 %v539, 4294901760
  %v541 = vsub.f32 %v539, %v540
  %v542 = vand.u32 %v541, 4294901760
  %543 = vmatmul.mubr.f32.gmra.mxu0 %v542
  %v544 = vpop.f32.mrf.mxu0
  %v545 = vadd.f32 0.0, %v544
  %v546 = vpop.f32.mrf.mxu0
  %547 = vdwg.mxu0
  %548 = vmatprep.subr.mxu0 0.0
  %549 = vmatpush1.msra.mxu0 0.0
  %550 = vmatprep.subr.mxu0 0.0
  %551 = vmatpush1.msra.mxu0 0.0
  %552 = vmatprep.subr.mxu0 0.0
  %553 = vmatpush1.msra.mxu0 0.0
  %554 = vmatprep.subr.mxu0 0.0
  %555 = vmatpush1.msra.mxu0 0.0
  %556 = vmatprep.subr.mxu0 0.0
  %557 = vmatpush1.msra.mxu0 0.0
  %558 = vmatprep.subr.mxu0 0.0
  %559 = vmatpush1.msra.mxu0 0.0
  %560 = vmatprep.subr.mxu0 0.0
  %561 = vmatpush1.msra.mxu0 0.0
  %562 = vmatprep.subr.mxu0 0.0
  %563 = vmatpush1.msra.mxu0 0.0
  %564 = vmatprep.subr.mxu0 0.0
  %565 = vmatpush1.msra.mxu0 0.0
  %566 = vmatprep.subr.mxu0 0.0
  %567 = vmatpush1.msra.mxu0 0.0
  %568 = vmatprep.subr.mxu0 0.0
  %569 = vmatpush1.msra.mxu0 0.0
  %570 = vmatprep.subr.mxu0 0.0
  %571 = vmatpush1.msra.mxu0 0.0
  %572 = vmatprep.subr.mxu0 0.0
  %573 = vmatpush1.msra.mxu0 0.0
  %574 = vmatprep.subr.mxu0 0.0
  %575 = vmatpush1.msra.mxu0 0.0
  %576 = vmatprep.subr.mxu0 0.0
  %577 = vmatpush1.msra.mxu0 0.0
  %578 = vmatprep.subr.mxu0 0.0
  %v579 = vand.u32 %v468, 4294901760
  %v580 = vsub.f32 %v468, %v579
  %v581 = vand.u32 %v580, 4294901760
  %v582 = vsub.f32 %v580, %v581
  %v583 = vand.u32 %v582, 4294901760
  %584 = vmatpush1.msra.mxu0 %v583
  %585 = vmatprep.subr.mxu0 0.0
  %586 = vmatpush2.msra.mxu0 0.0
  %587 = vmatprep.subr.mxu0 0.0
  %588 = vmatpush2.msra.mxu0 0.0
  %589 = vmatprep.subr.mxu0 0.0
  %590 = vmatpush2.msra.mxu0 0.0
  %591 = vmatprep.subr.mxu0 0.0
  %592 = vmatpush2.msra.mxu0 0.0
  %593 = vmatprep.subr.mxu0 0.0
  %594 = vmatpush2.msra.mxu0 0.0
  %595 = vmatprep.subr.mxu0 0.0
  %596 = vmatpush2.msra.mxu0 0.0
  %597 = vmatprep.subr.mxu0 0.0
  %598 = vmatpush2.msra.mxu0 0.0
  %599 = vmatprep.subr.mxu0 0.0
  %600 = vmatpush2.msra.mxu0 0.0
  %601 = vmatprep.subr.mxu0 0.0
  %602 = vmatpush2.msra.mxu0 0.0
  %603 = vmatprep.subr.mxu0 0.0
  %604 = vmatpush2.msra.mxu0 0.0
  %605 = vmatprep.subr.mxu0 0.0
  %606 = vmatpush2.msra.mxu0 0.0
  %607 = vmatprep.subr.mxu0 0.0
  %608 = vmatpush2.msra.mxu0 0.0
  %609 = vmatprep.subr.mxu0 0.0
  %610 = vmatpush2.msra.mxu0 0.0
  %611 = vmatprep.subr.mxu0 0.0
  %612 = vmatpush2.msra.mxu0 0.0
  %613 = vmatprep.subr.mxu0 0.0
  %614 = vmatpush2.msra.mxu0 0.0
  %615 = vmatprep.subr.mxu0 0.0
  %616 = vmatpush2.msra.mxu0 0.0
  %617 = vmatprep.mubr.f32.mxu0 0.0
  %v618 = vand.u32 %v470, 4294901760
  %619 = vmatmul.mubr.f32.gmra.mxu0 %v618
  %v620 = vpop.f32.mrf.mxu0
  %v621 = vadd.f32 %v545, %v620
  %v622 = vpop.f32.mrf.mxu0
  %623 = vdwg.mxu0
  %624 = vmatprep.subr.mxu0 0.0
  %625 = vmatpush1.msra.mxu0 0.0
  %626 = vmatprep.subr.mxu0 0.0
  %627 = vmatpush1.msra.mxu0 0.0
  %628 = vmatprep.subr.mxu0 0.0
  %629 = vmatpush1.msra.mxu0 0.0
  %630 = vmatprep.subr.mxu0 0.0
  %631 = vmatpush1.msra.mxu0 0.0
  %632 = vmatprep.subr.mxu0 0.0
  %633 = vmatpush1.msra.mxu0 0.0
  %634 = vmatprep.subr.mxu0 0.0
  %635 = vmatpush1.msra.mxu0 0.0
  %636 = vmatprep.subr.mxu0 0.0
  %637 = vmatpush1.msra.mxu0 0.0
  %638 = vmatprep.subr.mxu0 0.0
  %639 = vmatpush1.msra.mxu0 0.0
  %640 = vmatprep.subr.mxu0 0.0
  %641 = vmatpush1.msra.mxu0 0.0
  %642 = vmatprep.subr.mxu0 0.0
  %643 = vmatpush1.msra.mxu0 0.0
  %644 = vmatprep.subr.mxu0 0.0
  %645 = vmatpush1.msra.mxu0 0.0
  %646 = vmatprep.subr.mxu0 0.0
  %647 = vmatpush1.msra.mxu0 0.0
  %648 = vmatprep.subr.mxu0 0.0
  %649 = vmatpush1.msra.mxu0 0.0
  %650 = vmatprep.subr.mxu0 0.0
  %651 = vmatpush1.msra.mxu0 0.0
  %652 = vmatprep.subr.mxu0 0.0
  %653 = vmatpush1.msra.mxu0 0.0
  %654 = vmatprep.subr.mxu0 0.0
  %v655 = vand.u32 %v468, 4294901760
  %v656 = vsub.f32 %v468, %v655
  %657 = vmatpush1.msra.mxu0 %v656
  %658 = vmatprep.subr.mxu0 0.0
  %659 = vmatpush2.msra.mxu0 0.0
  %660 = vmatprep.subr.mxu0 0.0
  %661 = vmatpush2.msra.mxu0 0.0
  %662 = vmatprep.subr.mxu0 0.0
  %663 = vmatpush2.msra.mxu0 0.0
  %664 = vmatprep.subr.mxu0 0.0
  %665 = vmatpush2.msra.mxu0 0.0
  %666 = vmatprep.subr.mxu0 0.0
  %667 = vmatpush2.msra.mxu0 0.0
  %668 = vmatprep.subr.mxu0 0.0
  %669 = vmatpush2.msra.mxu0 0.0
  %670 = vmatprep.subr.mxu0 0.0
  %671 = vmatpush2.msra.mxu0 0.0
  %672 = vmatprep.subr.mxu0 0.0
  %673 = vmatpush2.msra.mxu0 0.0
  %674 = vmatprep.subr.mxu0 0.0
  %675 = vmatpush2.msra.mxu0 0.0
  %676 = vmatprep.subr.mxu0 0.0
  %677 = vmatpush2.msra.mxu0 0.0
  %678 = vmatprep.subr.mxu0 0.0
  %679 = vmatpush2.msra.mxu0 0.0
  %680 = vmatprep.subr.mxu0 0.0
  %681 = vmatpush2.msra.mxu0 0.0
  %682 = vmatprep.subr.mxu0 0.0
  %683 = vmatpush2.msra.mxu0 0.0
  %684 = vmatprep.subr.mxu0 0.0
  %685 = vmatpush2.msra.mxu0 0.0
  %686 = vmatprep.subr.mxu0 0.0
  %687 = vmatpush2.msra.mxu0 0.0
  %688 = vmatprep.subr.mxu0 0.0
  %689 = vmatpush2.msra.mxu0 0.0
  %690 = vmatprep.mubr.f32.mxu0 0.0
  %v691 = vand.u32 %v470, 4294901760
  %v692 = vsub.f32 %v470, %v691
  %693 = vmatmul.mubr.f32.gmra.mxu0 %v692
  %v694 = vpop.f32.mrf.mxu0
  %v695 = vadd.f32 %v621, %v694
  %v696 = vpop.f32.mrf.mxu0
  %697 = vdwg.mxu0
  %698 = vmatprep.subr.mxu0 0.0
  %699 = vmatpush1.msra.mxu0 0.0
  %700 = vmatprep.subr.mxu0 0.0
  %701 = vmatpush1.msra.mxu0 0.0
  %702 = vmatprep.subr.mxu0 0.0
  %703 = vmatpush1.msra.mxu0 0.0
  %704 = vmatprep.subr.mxu0 0.0
  %705 = vmatpush1.msra.mxu0 0.0
  %706 = vmatprep.subr.mxu0 0.0
  %707 = vmatpush1.msra.mxu0 0.0
  %708 = vmatprep.subr.mxu0 0.0
  %709 = vmatpush1.msra.mxu0 0.0
  %710 = vmatprep.subr.mxu0 0.0
  %711 = vmatpush1.msra.mxu0 0.0
  %712 = vmatprep.subr.mxu0 0.0
  %713 = vmatpush1.msra.mxu0 0.0
  %714 = vmatprep.subr.mxu0 0.0
  %715 = vmatpush1.msra.mxu0 0.0
  %716 = vmatprep.subr.mxu0 0.0
  %717 = vmatpush1.msra.mxu0 0.0
  %718 = vmatprep.subr.mxu0 0.0
  %719 = vmatpush1.msra.mxu0 0.0
  %720 = vmatprep.subr.mxu0 0.0
  %721 = vmatpush1.msra.mxu0 0.0
  %722 = vmatprep.subr.mxu0 0.0
  %723 = vmatpush1.msra.mxu0 0.0
  %724 = vmatprep.subr.mxu0 0.0
  %725 = vmatpush1.msra.mxu0 0.0
  %726 = vmatprep.subr.mxu0 0.0
  %727 = vmatpush1.msra.mxu0 0.0
  %728 = vmatprep.subr.mxu0 0.0
  %v729 = vand.u32 %v468, 4294901760
  %730 = vmatpush1.msra.mxu0 %v729
  %731 = vmatprep.subr.mxu0 0.0
  %732 = vmatpush2.msra.mxu0 0.0
  %733 = vmatprep.subr.mxu0 0.0
  %734 = vmatpush2.msra.mxu0 0.0
  %735 = vmatprep.subr.mxu0 0.0
  %736 = vmatpush2.msra.mxu0 0.0
  %737 = vmatprep.subr.mxu0 0.0
  %738 = vmatpush2.msra.mxu0 0.0
  %739 = vmatprep.subr.mxu0 0.0
  %740 = vmatpush2.msra.mxu0 0.0
  %741 = vmatprep.subr.mxu0 0.0
  %742 = vmatpush2.msra.mxu0 0.0
  %743 = vmatprep.subr.mxu0 0.0
  %744 = vmatpush2.msra.mxu0 0.0
  %745 = vmatprep.subr.mxu0 0.0
  %746 = vmatpush2.msra.mxu0 0.0
  %747 = vmatprep.subr.mxu0 0.0
  %748 = vmatpush2.msra.mxu0 0.0
  %749 = vmatprep.subr.mxu0 0.0
  %750 = vmatpush2.msra.mxu0 0.0
  %751 = vmatprep.subr.mxu0 0.0
  %752 = vmatpush2.msra.mxu0 0.0
  %753 = vmatprep.subr.mxu0 0.0
  %754 = vmatpush2.msra.mxu0 0.0
  %755 = vmatprep.subr.mxu0 0.0
  %756 = vmatpush2.msra.mxu0 0.0
  %757 = vmatprep.subr.mxu0 0.0
  %758 = vmatpush2.msra.mxu0 0.0
  %759 = vmatprep.subr.mxu0 0.0
  %760 = vmatpush2.msra.mxu0 0.0
  %761 = vmatprep.subr.mxu0 0.0
  %762 = vmatpush2.msra.mxu0 0.0
  %763 = vmatprep.mubr.f32.mxu0 0.0
  %v764 = vand.u32 %v470, 4294901760
  %v765 = vsub.f32 %v470, %v764
  %v766 = vand.u32 %v765, 4294901760
  %767 = vmatmul.mubr.f32.gmra.mxu0 %v766
  %v768 = vpop.f32.mrf.mxu0
  %v769 = vadd.f32 %v695, %v768
  %v770 = vpop.f32.mrf.mxu0
  %771 = vdwg.mxu0
  %772 = vmatprep.subr.mxu0 0.0
  %773 = vmatpush1.msra.mxu0 0.0
  %774 = vmatprep.subr.mxu0 0.0
  %775 = vmatpush1.msra.mxu0 0.0
  %776 = vmatprep.subr.mxu0 0.0
  %777 = vmatpush1.msra.mxu0 0.0
  %778 = vmatprep.subr.mxu0 0.0
  %779 = vmatpush1.msra.mxu0 0.0
  %780 = vmatprep.subr.mxu0 0.0
  %781 = vmatpush1.msra.mxu0 0.0
  %782 = vmatprep.subr.mxu0 0.0
  %783 = vmatpush1.msra.mxu0 0.0
  %784 = vmatprep.subr.mxu0 0.0
  %785 = vmatpush1.msra.mxu0 0.0
  %786 = vmatprep.subr.mxu0 0.0
  %787 = vmatpush1.msra.mxu0 0.0
  %788 = vmatprep.subr.mxu0 0.0
  %789 = vmatpush1.msra.mxu0 0.0
  %790 = vmatprep.subr.mxu0 0.0
  %791 = vmatpush1.msra.mxu0 0.0
  %792 = vmatprep.subr.mxu0 0.0
  %793 = vmatpush1.msra.mxu0 0.0
  %794 = vmatprep.subr.mxu0 0.0
  %795 = vmatpush1.msra.mxu0 0.0
  %796 = vmatprep.subr.mxu0 0.0
  %797 = vmatpush1.msra.mxu0 0.0
  %798 = vmatprep.subr.mxu0 0.0
  %799 = vmatpush1.msra.mxu0 0.0
  %800 = vmatprep.subr.mxu0 0.0
  %801 = vmatpush1.msra.mxu0 0.0
  %802 = vmatprep.subr.mxu0 0.0
  %v803 = vand.u32 %v468, 4294901760
  %v804 = vsub.f32 %v468, %v803
  %v805 = vand.u32 %v804, 4294901760
  %806 = vmatpush1.msra.mxu0 %v805
  %807 = vmatprep.subr.mxu0 0.0
  %808 = vmatpush2.msra.mxu0 0.0
  %809 = vmatprep.subr.mxu0 0.0
  %810 = vmatpush2.msra.mxu0 0.0
  %811 = vmatprep.subr.mxu0 0.0
  %812 = vmatpush2.msra.mxu0 0.0
  %813 = vmatprep.subr.mxu0 0.0
  %814 = vmatpush2.msra.mxu0 0.0
  %815 = vmatprep.subr.mxu0 0.0
  %816 = vmatpush2.msra.mxu0 0.0
  %817 = vmatprep.subr.mxu0 0.0
  %818 = vmatpush2.msra.mxu0 0.0
  %819 = vmatprep.subr.mxu0 0.0
  %820 = vmatpush2.msra.mxu0 0.0
  %821 = vmatprep.subr.mxu0 0.0
  %822 = vmatpush2.msra.mxu0 0.0
  %823 = vmatprep.subr.mxu0 0.0
  %824 = vmatpush2.msra.mxu0 0.0
  %825 = vmatprep.subr.mxu0 0.0
  %826 = vmatpush2.msra.mxu0 0.0
  %827 = vmatprep.subr.mxu0 0.0
  %828 = vmatpush2.msra.mxu0 0.0
  %829 = vmatprep.subr.mxu0 0.0
  %830 = vmatpush2.msra.mxu0 0.0
  %831 = vmatprep.subr.mxu0 0.0
  %832 = vmatpush2.msra.mxu0 0.0
  %833 = vmatprep.subr.mxu0 0.0
  %834 = vmatpush2.msra.mxu0 0.0
  %835 = vmatprep.subr.mxu0 0.0
  %836 = vmatpush2.msra.mxu0 0.0
  %837 = vmatprep.subr.mxu0 0.0
  %838 = vmatpush2.msra.mxu0 0.0
  %839 = vmatprep.mubr.f32.mxu0 0.0
  %v840 = vand.u32 %v470, 4294901760
  %841 = vmatmul.mubr.f32.gmra.mxu0 %v840
  %v842 = vpop.f32.mrf.mxu0
  %v843 = vadd.f32 %v769, %v842
  %v844 = vpop.f32.mrf.mxu0
  %845 = vdwg.mxu0
  %846 = vmatprep.subr.mxu0 0.0
  %847 = vmatpush1.msra.mxu0 0.0
  %848 = vmatprep.subr.mxu0 0.0
  %849 = vmatpush1.msra.mxu0 0.0
  %850 = vmatprep.subr.mxu0 0.0
  %851 = vmatpush1.msra.mxu0 0.0
  %852 = vmatprep.subr.mxu0 0.0
  %853 = vmatpush1.msra.mxu0 0.0
  %854 = vmatprep.subr.mxu0 0.0
  %855 = vmatpush1.msra.mxu0 0.0
  %856 = vmatprep.subr.mxu0 0.0
  %857 = vmatpush1.msra.mxu0 0.0
  %858 = vmatprep.subr.mxu0 0.0
  %859 = vmatpush1.msra.mxu0 0.0
  %860 = vmatprep.subr.mxu0 0.0
  %861 = vmatpush1.msra.mxu0 0.0
  %862 = vmatprep.subr.mxu0 0.0
  %863 = vmatpush1.msra.mxu0 0.0
  %864 = vmatprep.subr.mxu0 0.0
  %865 = vmatpush1.msra.mxu0 0.0
  %866 = vmatprep.subr.mxu0 0.0
  %867 = vmatpush1.msra.mxu0 0.0
  %868 = vmatprep.subr.mxu0 0.0
  %869 = vmatpush1.msra.mxu0 0.0
  %870 = vmatprep.subr.mxu0 0.0
  %871 = vmatpush1.msra.mxu0 0.0
  %872 = vmatprep.subr.mxu0 0.0
  %873 = vmatpush1.msra.mxu0 0.0
  %874 = vmatprep.subr.mxu0 0.0
  %875 = vmatpush1.msra.mxu0 0.0
  %876 = vmatprep.subr.mxu0 0.0
  %v877 = vand.u32 %v468, 4294901760
  %878 = vmatpush1.msra.mxu0 %v877
  %879 = vmatprep.subr.mxu0 0.0
  %880 = vmatpush2.msra.mxu0 0.0
  %881 = vmatprep.subr.mxu0 0.0
  %882 = vmatpush2.msra.mxu0 0.0
  %883 = vmatprep.subr.mxu0 0.0
  %884 = vmatpush2.msra.mxu0 0.0
  %885 = vmatprep.subr.mxu0 0.0
  %886 = vmatpush2.msra.mxu0 0.0
  %887 = vmatprep.subr.mxu0 0.0
  %888 = vmatpush2.msra.mxu0 0.0
  %889 = vmatprep.subr.mxu0 0.0
  %890 = vmatpush2.msra.mxu0 0.0
  %891 = vmatprep.subr.mxu0 0.0
  %892 = vmatpush2.msra.mxu0 0.0
  %893 = vmatprep.subr.mxu0 0.0
  %894 = vmatpush2.msra.mxu0 0.0
  %895 = vmatprep.subr.mxu0 0.0
  %896 = vmatpush2.msra.mxu0 0.0
  %897 = vmatprep.subr.mxu0 0.0
  %898 = vmatpush2.msra.mxu0 0.0
  %899 = vmatprep.subr.mxu0 0.0
  %900 = vmatpush2.msra.mxu0 0.0
  %901 = vmatprep.subr.mxu0 0.0
  %902 = vmatpush2.msra.mxu0 0.0
  %903 = vmatprep.subr.mxu0 0.0
  %904 = vmatpush2.msra.mxu0 0.0
  %905 = vmatprep.subr.mxu0 0.0
  %906 = vmatpush2.msra.mxu0 0.0
  %907 = vmatprep.subr.mxu0 0.0
  %908 = vmatpush2.msra.mxu0 0.0
  %909 = vmatprep.subr.mxu0 0.0
  %910 = vmatpush2.msra.mxu0 0.0
  %911 = vmatprep.mubr.f32.mxu0 0.0
  %v912 = vand.u32 %v470, 4294901760
  %913 = vmatmul.mubr.f32.gmra.mxu0 %v912
  %v914 = vpop.f32.mrf.mxu0
  %v915 = vadd.f32 %v843, %v914
  %v916 = vpop.f32.mrf.mxu0
  %917 = vdwg.mxu0
  %s918 = scalar_lea.vmem %s2, 2
  %919 = vst.msk [vmem:[%s918] sm:$0x3] %vm463, %v915
  %s920 = scalar_lea.vmem %s0, 4
  %v921 = vld [vmem:[%s920] sm:$0x3]
  %s922 = scalar_lea.vmem %s1, 16
  %v923 = vld [vmem:[%s922] sm:$0xff]
  %v925 = vsel %vm13, %v921, 0
  %927 = vmatprep.subr.mxu0 0.0
  %928 = vmatpush1.msra.mxu0 0.0
  %929 = vmatprep.subr.mxu0 0.0
  %930 = vmatpush1.msra.mxu0 0.0
  %931 = vmatprep.subr.mxu0 0.0
  %932 = vmatpush1.msra.mxu0 0.0
  %933 = vmatprep.subr.mxu0 0.0
  %934 = vmatpush1.msra.mxu0 0.0
  %935 = vmatprep.subr.mxu0 0.0
  %936 = vmatpush1.msra.mxu0 0.0
  %937 = vmatprep.subr.mxu0 0.0
  %938 = vmatpush1.msra.mxu0 0.0
  %939 = vmatprep.subr.mxu0 0.0
  %940 = vmatpush1.msra.mxu0 0.0
  %941 = vmatprep.subr.mxu0 0.0
  %942 = vmatpush1.msra.mxu0 0.0
  %943 = vmatprep.subr.mxu0 0.0
  %944 = vmatpush1.msra.mxu0 0.0
  %945 = vmatprep.subr.mxu0 0.0
  %946 = vmatpush1.msra.mxu0 0.0
  %947 = vmatprep.subr.mxu0 0.0
  %948 = vmatpush1.msra.mxu0 0.0
  %949 = vmatprep.subr.mxu0 0.0
  %950 = vmatpush1.msra.mxu0 0.0
  %951 = vmatprep.subr.mxu0 0.0
  %952 = vmatpush1.msra.mxu0 0.0
  %953 = vmatprep.subr.mxu0 0.0
  %954 = vmatpush1.msra.mxu0 0.0
  %955 = vmatprep.subr.mxu0 0.0
  %956 = vmatpush1.msra.mxu0 0.0
  %957 = vmatprep.subr.mxu0 0.0
  %v958 = vand.u32 %v923, 4294901760
  %959 = vmatpush1.msra.mxu0 %v958
  %960 = vmatprep.subr.mxu0 0.0
  %961 = vmatpush2.msra.mxu0 0.0
  %962 = vmatprep.subr.mxu0 0.0
  %963 = vmatpush2.msra.mxu0 0.0
  %964 = vmatprep.subr.mxu0 0.0
  %965 = vmatpush2.msra.mxu0 0.0
  %966 = vmatprep.subr.mxu0 0.0
  %967 = vmatpush2.msra.mxu0 0.0
  %968 = vmatprep.subr.mxu0 0.0
  %969 = vmatpush2.msra.mxu0 0.0
  %970 = vmatprep.subr.mxu0 0.0
  %971 = vmatpush2.msra.mxu0 0.0
  %972 = vmatprep.subr.mxu0 0.0
  %973 = vmatpush2.msra.mxu0 0.0
  %974 = vmatprep.subr.mxu0 0.0
  %975 = vmatpush2.msra.mxu0 0.0
  %976 = vmatprep.subr.mxu0 0.0
  %977 = vmatpush2.msra.mxu0 0.0
  %978 = vmatprep.subr.mxu0 0.0
  %979 = vmatpush2.msra.mxu0 0.0
  %980 = vmatprep.subr.mxu0 0.0
  %981 = vmatpush2.msra.mxu0 0.0
  %982 = vmatprep.subr.mxu0 0.0
  %983 = vmatpush2.msra.mxu0 0.0
  %984 = vmatprep.subr.mxu0 0.0
  %985 = vmatpush2.msra.mxu0 0.0
  %986 = vmatprep.subr.mxu0 0.0
  %987 = vmatpush2.msra.mxu0 0.0
  %988 = vmatprep.subr.mxu0 0.0
  %989 = vmatpush2.msra.mxu0 0.0
  %990 = vmatprep.subr.mxu0 0.0
  %991 = vmatpush2.msra.mxu0 0.0
  %992 = vmatprep.mubr.f32.mxu0 0.0
  %v993 = vand.u32 %v925, 4294901760
  %v994 = vsub.f32 %v925, %v993
  %v995 = vand.u32 %v994, 4294901760
  %v996 = vsub.f32 %v994, %v995
  %v997 = vand.u32 %v996, 4294901760
  %998 = vmatmul.mubr.f32.gmra.mxu0 %v997
  %v999 = vpop.f32.mrf.mxu0
  %v1000 = vadd.f32 0.0, %v999
  %v1001 = vpop.f32.mrf.mxu0
  %1002 = vdwg.mxu0
  %1003 = vmatprep.subr.mxu0 0.0
  %1004 = vmatpush1.msra.mxu0 0.0
  %1005 = vmatprep.subr.mxu0 0.0
  %1006 = vmatpush1.msra.mxu0 0.0
  %1007 = vmatprep.subr.mxu0 0.0
  %1008 = vmatpush1.msra.mxu0 0.0
  %1009 = vmatprep.subr.mxu0 0.0
  %1010 = vmatpush1.msra.mxu0 0.0
  %1011 = vmatprep.subr.mxu0 0.0
  %1012 = vmatpush1.msra.mxu0 0.0
  %1013 = vmatprep.subr.mxu0 0.0
  %1014 = vmatpush1.msra.mxu0 0.0
  %1015 = vmatprep.subr.mxu0 0.0
  %1016 = vmatpush1.msra.mxu0 0.0
  %1017 = vmatprep.subr.mxu0 0.0
  %1018 = vmatpush1.msra.mxu0 0.0
  %1019 = vmatprep.subr.mxu0 0.0
  %1020 = vmatpush1.msra.mxu0 0.0
  %1021 = vmatprep.subr.mxu0 0.0
  %1022 = vmatpush1.msra.mxu0 0.0
  %1023 = vmatprep.subr.mxu0 0.0
  %1024 = vmatpush1.msra.mxu0 0.0
  %1025 = vmatprep.subr.mxu0 0.0
  %1026 = vmatpush1.msra.mxu0 0.0
  %1027 = vmatprep.subr.mxu0 0.0
  %1028 = vmatpush1.msra.mxu0 0.0
  %1029 = vmatprep.subr.mxu0 0.0
  %1030 = vmatpush1.msra.mxu0 0.0
  %1031 = vmatprep.subr.mxu0 0.0
  %1032 = vmatpush1.msra.mxu0 0.0
  %1033 = vmatprep.subr.mxu0 0.0
  %v1034 = vand.u32 %v923, 4294901760
  %v1035 = vsub.f32 %v923, %v1034
  %v1036 = vand.u32 %v1035, 4294901760
  %v1037 = vsub.f32 %v1035, %v1036
  %v1038 = vand.u32 %v1037, 4294901760
  %1039 = vmatpush1.msra.mxu0 %v1038
  %1040 = vmatprep.subr.mxu0 0.0
  %1041 = vmatpush2.msra.mxu0 0.0
  %1042 = vmatprep.subr.mxu0 0.0
  %1043 = vmatpush2.msra.mxu0 0.0
  %1044 = vmatprep.subr.mxu0 0.0
  %1045 = vmatpush2.msra.mxu0 0.0
  %1046 = vmatprep.subr.mxu0 0.0
  %1047 = vmatpush2.msra.mxu0 0.0
  %1048 = vmatprep.subr.mxu0 0.0
  %1049 = vmatpush2.msra.mxu0 0.0
  %1050 = vmatprep.subr.mxu0 0.0
  %1051 = vmatpush2.msra.mxu0 0.0
  %1052 = vmatprep.subr.mxu0 0.0
  %1053 = vmatpush2.msra.mxu0 0.0
  %1054 = vmatprep.subr.mxu0 0.0
  %1055 = vmatpush2.msra.mxu0 0.0
  %1056 = vmatprep.subr.mxu0 0.0
  %1057 = vmatpush2.msra.mxu0 0.0
  %1058 = vmatprep.subr.mxu0 0.0
  %1059 = vmatpush2.msra.mxu0 0.0
  %1060 = vmatprep.subr.mxu0 0.0
  %1061 = vmatpush2.msra.mxu0 0.0
  %1062 = vmatprep.subr.mxu0 0.0
  %1063 = vmatpush2.msra.mxu0 0.0
  %1064 = vmatprep.subr.mxu0 0.0
  %1065 = vmatpush2.msra.mxu0 0.0
  %1066 = vmatprep.subr.mxu0 0.0
  %1067 = vmatpush2.msra.mxu0 0.0
  %1068 = vmatprep.subr.mxu0 0.0
  %1069 = vmatpush2.msra.mxu0 0.0
  %1070 = vmatprep.subr.mxu0 0.0
  %1071 = vmatpush2.msra.mxu0 0.0
  %1072 = vmatprep.mubr.f32.mxu0 0.0
  %v1073 = vand.u32 %v925, 4294901760
  %1074 = vmatmul.mubr.f32.gmra.mxu0 %v1073
  %v1075 = vpop.f32.mrf.mxu0
  %v1076 = vadd.f32 %v1000, %v1075
  %v1077 = vpop.f32.mrf.mxu0
  %1078 = vdwg.mxu0
  %1079 = vmatprep.subr.mxu0 0.0
  %1080 = vmatpush1.msra.mxu0 0.0
  %1081 = vmatprep.subr.mxu0 0.0
  %1082 = vmatpush1.msra.mxu0 0.0
  %1083 = vmatprep.subr.mxu0 0.0
  %1084 = vmatpush1.msra.mxu0 0.0
  %1085 = vmatprep.subr.mxu0 0.0
  %1086 = vmatpush1.msra.mxu0 0.0
  %1087 = vmatprep.subr.mxu0 0.0
  %1088 = vmatpush1.msra.mxu0 0.0
  %1089 = vmatprep.subr.mxu0 0.0
  %1090 = vmatpush1.msra.mxu0 0.0
  %1091 = vmatprep.subr.mxu0 0.0
  %1092 = vmatpush1.msra.mxu0 0.0
  %1093 = vmatprep.subr.mxu0 0.0
  %1094 = vmatpush1.msra.mxu0 0.0
  %1095 = vmatprep.subr.mxu0 0.0
  %1096 = vmatpush1.msra.mxu0 0.0
  %1097 = vmatprep.subr.mxu0 0.0
  %1098 = vmatpush1.msra.mxu0 0.0
  %1099 = vmatprep.subr.mxu0 0.0
  %1100 = vmatpush1.msra.mxu0 0.0
  %1101 = vmatprep.subr.mxu0 0.0
  %1102 = vmatpush1.msra.mxu0 0.0
  %1103 = vmatprep.subr.mxu0 0.0
  %1104 = vmatpush1.msra.mxu0 0.0
  %1105 = vmatprep.subr.mxu0 0.0
  %1106 = vmatpush1.msra.mxu0 0.0
  %1107 = vmatprep.subr.mxu0 0.0
  %1108 = vmatpush1.msra.mxu0 0.0
  %1109 = vmatprep.subr.mxu0 0.0
  %v1110 = vand.u32 %v923, 4294901760
  %v1111 = vsub.f32 %v923, %v1110
  %1112 = vmatpush1.msra.mxu0 %v1111
  %1113 = vmatprep.subr.mxu0 0.0
  %1114 = vmatpush2.msra.mxu0 0.0
  %1115 = vmatprep.subr.mxu0 0.0
  %1116 = vmatpush2.msra.mxu0 0.0
  %1117 = vmatprep.subr.mxu0 0.0
  %1118 = vmatpush2.msra.mxu0 0.0
  %1119 = vmatprep.subr.mxu0 0.0
  %1120 = vmatpush2.msra.mxu0 0.0
  %1121 = vmatprep.subr.mxu0 0.0
  %1122 = vmatpush2.msra.mxu0 0.0
  %1123 = vmatprep.subr.mxu0 0.0
  %1124 = vmatpush2.msra.mxu0 0.0
  %1125 = vmatprep.subr.mxu0 0.0
  %1126 = vmatpush2.msra.mxu0 0.0
  %1127 = vmatprep.subr.mxu0 0.0
  %1128 = vmatpush2.msra.mxu0 0.0
  %1129 = vmatprep.subr.mxu0 0.0
  %1130 = vmatpush2.msra.mxu0 0.0
  %1131 = vmatprep.subr.mxu0 0.0
  %1132 = vmatpush2.msra.mxu0 0.0
  %1133 = vmatprep.subr.mxu0 0.0
  %1134 = vmatpush2.msra.mxu0 0.0
  %1135 = vmatprep.subr.mxu0 0.0
  %1136 = vmatpush2.msra.mxu0 0.0
  %1137 = vmatprep.subr.mxu0 0.0
  %1138 = vmatpush2.msra.mxu0 0.0
  %1139 = vmatprep.subr.mxu0 0.0
  %1140 = vmatpush2.msra.mxu0 0.0
  %1141 = vmatprep.subr.mxu0 0.0
  %1142 = vmatpush2.msra.mxu0 0.0
  %1143 = vmatprep.subr.mxu0 0.0
  %1144 = vmatpush2.msra.mxu0 0.0
  %1145 = vmatprep.mubr.f32.mxu0 0.0
  %v1146 = vand.u32 %v925, 4294901760
  %v1147 = vsub.f32 %v925, %v1146
  %1148 = vmatmul.mubr.f32.gmra.mxu0 %v1147
  %v1149 = vpop.f32.mrf.mxu0
  %v1150 = vadd.f32 %v1076, %v1149
  %v1151 = vpop.f32.mrf.mxu0
  %1152 = vdwg.mxu0
  %1153 = vmatprep.subr.mxu0 0.0
  %1154 = vmatpush1.msra.mxu0 0.0
  %1155 = vmatprep.subr.mxu0 0.0
  %1156 = vmatpush1.msra.mxu0 0.0
  %1157 = vmatprep.subr.mxu0 0.0
  %1158 = vmatpush1.msra.mxu0 0.0
  %1159 = vmatprep.subr.mxu0 0.0
  %1160 = vmatpush1.msra.mxu0 0.0
  %1161 = vmatprep.subr.mxu0 0.0
  %1162 = vmatpush1.msra.mxu0 0.0
  %1163 = vmatprep.subr.mxu0 0.0
  %1164 = vmatpush1.msra.mxu0 0.0
  %1165 = vmatprep.subr.mxu0 0.0
  %1166 = vmatpush1.msra.mxu0 0.0
  %1167 = vmatprep.subr.mxu0 0.0
  %1168 = vmatpush1.msra.mxu0 0.0
  %1169 = vmatprep.subr.mxu0 0.0
  %1170 = vmatpush1.msra.mxu0 0.0
  %1171 = vmatprep.subr.mxu0 0.0
  %1172 = vmatpush1.msra.mxu0 0.0
  %1173 = vmatprep.subr.mxu0 0.0
  %1174 = vmatpush1.msra.mxu0 0.0
  %1175 = vmatprep.subr.mxu0 0.0
  %1176 = vmatpush1.msra.mxu0 0.0
  %1177 = vmatprep.subr.mxu0 0.0
  %1178 = vmatpush1.msra.mxu0 0.0
  %1179 = vmatprep.subr.mxu0 0.0
  %1180 = vmatpush1.msra.mxu0 0.0
  %1181 = vmatprep.subr.mxu0 0.0
  %1182 = vmatpush1.msra.mxu0 0.0
  %1183 = vmatprep.subr.mxu0 0.0
  %v1184 = vand.u32 %v923, 4294901760
  %1185 = vmatpush1.msra.mxu0 %v1184
  %1186 = vmatprep.subr.mxu0 0.0
  %1187 = vmatpush2.msra.mxu0 0.0
  %1188 = vmatprep.subr.mxu0 0.0
  %1189 = vmatpush2.msra.mxu0 0.0
  %1190 = vmatprep.subr.mxu0 0.0
  %1191 = vmatpush2.msra.mxu0 0.0
  %1192 = vmatprep.subr.mxu0 0.0
  %1193 = vmatpush2.msra.mxu0 0.0
  %1194 = vmatprep.subr.mxu0 0.0
  %1195 = vmatpush2.msra.mxu0 0.0
  %1196 = vmatprep.subr.mxu0 0.0
  %1197 = vmatpush2.msra.mxu0 0.0
  %1198 = vmatprep.subr.mxu0 0.0
  %1199 = vmatpush2.msra.mxu0 0.0
  %1200 = vmatprep.subr.mxu0 0.0
  %1201 = vmatpush2.msra.mxu0 0.0
  %1202 = vmatprep.subr.mxu0 0.0
  %1203 = vmatpush2.msra.mxu0 0.0
  %1204 = vmatprep.subr.mxu0 0.0
  %1205 = vmatpush2.msra.mxu0 0.0
  %1206 = vmatprep.subr.mxu0 0.0
  %1207 = vmatpush2.msra.mxu0 0.0
  %1208 = vmatprep.subr.mxu0 0.0
  %1209 = vmatpush2.msra.mxu0 0.0
  %1210 = vmatprep.subr.mxu0 0.0
  %1211 = vmatpush2.msra.mxu0 0.0
  %1212 = vmatprep.subr.mxu0 0.0
  %1213 = vmatpush2.msra.mxu0 0.0
  %1214 = vmatprep.subr.mxu0 0.0
  %1215 = vmatpush2.msra.mxu0 0.0
  %1216 = vmatprep.subr.mxu0 0.0
  %1217 = vmatpush2.msra.mxu0 0.0
  %1218 = vmatprep.mubr.f32.mxu0 0.0
  %v1219 = vand.u32 %v925, 4294901760
  %v1220 = vsub.f32 %v925, %v1219
  %v1221 = vand.u32 %v1220, 4294901760
  %1222 = vmatmul.mubr.f32.gmra.mxu0 %v1221
  %v1223 = vpop.f32.mrf.mxu0
  %v1224 = vadd.f32 %v1150, %v1223
  %v1225 = vpop.f32.mrf.mxu0
  %1226 = vdwg.mxu0
  %1227 = vmatprep.subr.mxu0 0.0
  %1228 = vmatpush1.msra.mxu0 0.0
  %1229 = vmatprep.subr.mxu0 0.0
  %1230 = vmatpush1.msra.mxu0 0.0
  %1231 = vmatprep.subr.mxu0 0.0
  %1232 = vmatpush1.msra.mxu0 0.0
  %1233 = vmatprep.subr.mxu0 0.0
  %1234 = vmatpush1.msra.mxu0 0.0
  %1235 = vmatprep.subr.mxu0 0.0
  %1236 = vmatpush1.msra.mxu0 0.0
  %1237 = vmatprep.subr.mxu0 0.0
  %1238 = vmatpush1.msra.mxu0 0.0
  %1239 = vmatprep.subr.mxu0 0.0
  %1240 = vmatpush1.msra.mxu0 0.0
  %1241 = vmatprep.subr.mxu0 0.0
  %1242 = vmatpush1.msra.mxu0 0.0
  %1243 = vmatprep.subr.mxu0 0.0
  %1244 = vmatpush1.msra.mxu0 0.0
  %1245 = vmatprep.subr.mxu0 0.0
  %1246 = vmatpush1.msra.mxu0 0.0
  %1247 = vmatprep.subr.mxu0 0.0
  %1248 = vmatpush1.msra.mxu0 0.0
  %1249 = vmatprep.subr.mxu0 0.0
  %1250 = vmatpush1.msra.mxu0 0.0
  %1251 = vmatprep.subr.mxu0 0.0
  %1252 = vmatpush1.msra.mxu0 0.0
  %1253 = vmatprep.subr.mxu0 0.0
  %1254 = vmatpush1.msra.mxu0 0.0
  %1255 = vmatprep.subr.mxu0 0.0
  %1256 = vmatpush1.msra.mxu0 0.0
  %1257 = vmatprep.subr.mxu0 0.0
  %v1258 = vand.u32 %v923, 4294901760
  %v1259 = vsub.f32 %v923, %v1258
  %v1260 = vand.u32 %v1259, 4294901760
  %1261 = vmatpush1.msra.mxu0 %v1260
  %1262 = vmatprep.subr.mxu0 0.0
  %1263 = vmatpush2.msra.mxu0 0.0
  %1264 = vmatprep.subr.mxu0 0.0
  %1265 = vmatpush2.msra.mxu0 0.0
  %1266 = vmatprep.subr.mxu0 0.0
  %1267 = vmatpush2.msra.mxu0 0.0
  %1268 = vmatprep.subr.mxu0 0.0
  %1269 = vmatpush2.msra.mxu0 0.0
  %1270 = vmatprep.subr.mxu0 0.0
  %1271 = vmatpush2.msra.mxu0 0.0
  %1272 = vmatprep.subr.mxu0 0.0
  %1273 = vmatpush2.msra.mxu0 0.0
  %1274 = vmatprep.subr.mxu0 0.0
  %1275 = vmatpush2.msra.mxu0 0.0
  %1276 = vmatprep.subr.mxu0 0.0
  %1277 = vmatpush2.msra.mxu0 0.0
  %1278 = vmatprep.subr.mxu0 0.0
  %1279 = vmatpush2.msra.mxu0 0.0
  %1280 = vmatprep.subr.mxu0 0.0
  %1281 = vmatpush2.msra.mxu0 0.0
  %1282 = vmatprep.subr.mxu0 0.0
  %1283 = vmatpush2.msra.mxu0 0.0
  %1284 = vmatprep.subr.mxu0 0.0
  %1285 = vmatpush2.msra.mxu0 0.0
  %1286 = vmatprep.subr.mxu0 0.0
  %1287 = vmatpush2.msra.mxu0 0.0
  %1288 = vmatprep.subr.mxu0 0.0
  %1289 = vmatpush2.msra.mxu0 0.0
  %1290 = vmatprep.subr.mxu0 0.0
  %1291 = vmatpush2.msra.mxu0 0.0
  %1292 = vmatprep.subr.mxu0 0.0
  %1293 = vmatpush2.msra.mxu0 0.0
  %1294 = vmatprep.mubr.f32.mxu0 0.0
  %v1295 = vand.u32 %v925, 4294901760
  %1296 = vmatmul.mubr.f32.gmra.mxu0 %v1295
  %v1297 = vpop.f32.mrf.mxu0
  %v1298 = vadd.f32 %v1224, %v1297
  %v1299 = vpop.f32.mrf.mxu0
  %1300 = vdwg.mxu0
  %1301 = vmatprep.subr.mxu0 0.0
  %1302 = vmatpush1.msra.mxu0 0.0
  %1303 = vmatprep.subr.mxu0 0.0
  %1304 = vmatpush1.msra.mxu0 0.0
  %1305 = vmatprep.subr.mxu0 0.0
  %1306 = vmatpush1.msra.mxu0 0.0
  %1307 = vmatprep.subr.mxu0 0.0
  %1308 = vmatpush1.msra.mxu0 0.0
  %1309 = vmatprep.subr.mxu0 0.0
  %1310 = vmatpush1.msra.mxu0 0.0
  %1311 = vmatprep.subr.mxu0 0.0
  %1312 = vmatpush1.msra.mxu0 0.0
  %1313 = vmatprep.subr.mxu0 0.0
  %1314 = vmatpush1.msra.mxu0 0.0
  %1315 = vmatprep.subr.mxu0 0.0
  %1316 = vmatpush1.msra.mxu0 0.0
  %1317 = vmatprep.subr.mxu0 0.0
  %1318 = vmatpush1.msra.mxu0 0.0
  %1319 = vmatprep.subr.mxu0 0.0
  %1320 = vmatpush1.msra.mxu0 0.0
  %1321 = vmatprep.subr.mxu0 0.0
  %1322 = vmatpush1.msra.mxu0 0.0
  %1323 = vmatprep.subr.mxu0 0.0
  %1324 = vmatpush1.msra.mxu0 0.0
  %1325 = vmatprep.subr.mxu0 0.0
  %1326 = vmatpush1.msra.mxu0 0.0
  %1327 = vmatprep.subr.mxu0 0.0
  %1328 = vmatpush1.msra.mxu0 0.0
  %1329 = vmatprep.subr.mxu0 0.0
  %1330 = vmatpush1.msra.mxu0 0.0
  %1331 = vmatprep.subr.mxu0 0.0
  %v1332 = vand.u32 %v923, 4294901760
  %1333 = vmatpush1.msra.mxu0 %v1332
  %1334 = vmatprep.subr.mxu0 0.0
  %1335 = vmatpush2.msra.mxu0 0.0
  %1336 = vmatprep.subr.mxu0 0.0
  %1337 = vmatpush2.msra.mxu0 0.0
  %1338 = vmatprep.subr.mxu0 0.0
  %1339 = vmatpush2.msra.mxu0 0.0
  %1340 = vmatprep.subr.mxu0 0.0
  %1341 = vmatpush2.msra.mxu0 0.0
  %1342 = vmatprep.subr.mxu0 0.0
  %1343 = vmatpush2.msra.mxu0 0.0
  %1344 = vmatprep.subr.mxu0 0.0
  %1345 = vmatpush2.msra.mxu0 0.0
  %1346 = vmatprep.subr.mxu0 0.0
  %1347 = vmatpush2.msra.mxu0 0.0
  %1348 = vmatprep.subr.mxu0 0.0
  %1349 = vmatpush2.msra.mxu0 0.0
  %1350 = vmatprep.subr.mxu0 0.0
  %1351 = vmatpush2.msra.mxu0 0.0
  %1352 = vmatprep.subr.mxu0 0.0
  %1353 = vmatpush2.msra.mxu0 0.0
  %1354 = vmatprep.subr.mxu0 0.0
  %1355 = vmatpush2.msra.mxu0 0.0
  %1356 = vmatprep.subr.mxu0 0.0
  %1357 = vmatpush2.msra.mxu0 0.0
  %1358 = vmatprep.subr.mxu0 0.0
  %1359 = vmatpush2.msra.mxu0 0.0
  %1360 = vmatprep.subr.mxu0 0.0
  %1361 = vmatpush2.msra.mxu0 0.0
  %1362 = vmatprep.subr.mxu0 0.0
  %1363 = vmatpush2.msra.mxu0 0.0
  %1364 = vmatprep.subr.mxu0 0.0
  %1365 = vmatpush2.msra.mxu0 0.0
  %1366 = vmatprep.mubr.f32.mxu0 0.0
  %v1367 = vand.u32 %v925, 4294901760
  %1368 = vmatmul.mubr.f32.gmra.mxu0 %v1367
  %v1369 = vpop.f32.mrf.mxu0
  %v1370 = vadd.f32 %v1298, %v1369
  %v1371 = vpop.f32.mrf.mxu0
  %1372 = vdwg.mxu0
  %s1373 = scalar_lea.vmem %s2, 4
  %1374 = vst.msk [vmem:[%s1373] sm:$0x3] %vm463, %v1370
  %s1375 = scalar_lea.vmem %s0, 6
  %v1376 = vld [vmem:[%s1375] sm:$0x3]
  %s1377 = scalar_lea.vmem %s1, 24
  %v1378 = vld [vmem:[%s1377] sm:$0xff]
  %v1380 = vsel %vm13, %v1376, 0
  %1382 = vmatprep.subr.mxu0 0.0
  %1383 = vmatpush1.msra.mxu0 0.0
  %1384 = vmatprep.subr.mxu0 0.0
  %1385 = vmatpush1.msra.mxu0 0.0
  %1386 = vmatprep.subr.mxu0 0.0
  %1387 = vmatpush1.msra.mxu0 0.0
  %1388 = vmatprep.subr.mxu0 0.0
  %1389 = vmatpush1.msra.mxu0 0.0
  %1390 = vmatprep.subr.mxu0 0.0
  %1391 = vmatpush1.msra.mxu0 0.0
  %1392 = vmatprep.subr.mxu0 0.0
  %1393 = vmatpush1.msra.mxu0 0.0
  %1394 = vmatprep.subr.mxu0 0.0
  %1395 = vmatpush1.msra.mxu0 0.0
  %1396 = vmatprep.subr.mxu0 0.0
  %1397 = vmatpush1.msra.mxu0 0.0
  %1398 = vmatprep.subr.mxu0 0.0
  %1399 = vmatpush1.msra.mxu0 0.0
  %1400 = vmatprep.subr.mxu0 0.0
  %1401 = vmatpush1.msra.mxu0 0.0
  %1402 = vmatprep.subr.mxu0 0.0
  %1403 = vmatpush1.msra.mxu0 0.0
  %1404 = vmatprep.subr.mxu0 0.0
  %1405 = vmatpush1.msra.mxu0 0.0
  %1406 = vmatprep.subr.mxu0 0.0
  %1407 = vmatpush1.msra.mxu0 0.0
  %1408 = vmatprep.subr.mxu0 0.0
  %1409 = vmatpush1.msra.mxu0 0.0
  %1410 = vmatprep.subr.mxu0 0.0
  %1411 = vmatpush1.msra.mxu0 0.0
  %1412 = vmatprep.subr.mxu0 0.0
  %v1413 = vand.u32 %v1378, 4294901760
  %1414 = vmatpush1.msra.mxu0 %v1413
  %1415 = vmatprep.subr.mxu0 0.0
  %1416 = vmatpush2.msra.mxu0 0.0
  %1417 = vmatprep.subr.mxu0 0.0
  %1418 = vmatpush2.msra.mxu0 0.0
  %1419 = vmatprep.subr.mxu0 0.0
  %1420 = vmatpush2.msra.mxu0 0.0
  %1421 = vmatprep.subr.mxu0 0.0
  %1422 = vmatpush2.msra.mxu0 0.0
  %1423 = vmatprep.subr.mxu0 0.0
  %1424 = vmatpush2.msra.mxu0 0.0
  %1425 = vmatprep.subr.mxu0 0.0
  %1426 = vmatpush2.msra.mxu0 0.0
  %1427 = vmatprep.subr.mxu0 0.0
  %1428 = vmatpush2.msra.mxu0 0.0
  %1429 = vmatprep.subr.mxu0 0.0
  %1430 = vmatpush2.msra.mxu0 0.0
  %1431 = vmatprep.subr.mxu0 0.0
  %1432 = vmatpush2.msra.mxu0 0.0
  %1433 = vmatprep.subr.mxu0 0.0
  %1434 = vmatpush2.msra.mxu0 0.0
  %1435 = vmatprep.subr.mxu0 0.0
  %1436 = vmatpush2.msra.mxu0 0.0
  %1437 = vmatprep.subr.mxu0 0.0
  %1438 = vmatpush2.msra.mxu0 0.0
  %1439 = vmatprep.subr.mxu0 0.0
  %1440 = vmatpush2.msra.mxu0 0.0
  %1441 = vmatprep.subr.mxu0 0.0
  %1442 = vmatpush2.msra.mxu0 0.0
  %1443 = vmatprep.subr.mxu0 0.0
  %1444 = vmatpush2.msra.mxu0 0.0
  %1445 = vmatprep.subr.mxu0 0.0
  %1446 = vmatpush2.msra.mxu0 0.0
  %1447 = vmatprep.mubr.f32.mxu0 0.0
  %v1448 = vand.u32 %v1380, 4294901760
  %v1449 = vsub.f32 %v1380, %v1448
  %v1450 = vand.u32 %v1449, 4294901760
  %v1451 = vsub.f32 %v1449, %v1450
  %v1452 = vand.u32 %v1451, 4294901760
  %1453 = vmatmul.mubr.f32.gmra.mxu0 %v1452
  %v1454 = vpop.f32.mrf.mxu0
  %v1455 = vadd.f32 0.0, %v1454
  %v1456 = vpop.f32.mrf.mxu0
  %1457 = vdwg.mxu0
  %1458 = vmatprep.subr.mxu0 0.0
  %1459 = vmatpush1.msra.mxu0 0.0
  %1460 = vmatprep.subr.mxu0 0.0
  %1461 = vmatpush1.msra.mxu0 0.0
  %1462 = vmatprep.subr.mxu0 0.0
  %1463 = vmatpush1.msra.mxu0 0.0
  %1464 = vmatprep.subr.mxu0 0.0
  %1465 = vmatpush1.msra.mxu0 0.0
  %1466 = vmatprep.subr.mxu0 0.0
  %1467 = vmatpush1.msra.mxu0 0.0
  %1468 = vmatprep.subr.mxu0 0.0
  %1469 = vmatpush1.msra.mxu0 0.0
  %1470 = vmatprep.subr.mxu0 0.0
  %1471 = vmatpush1.msra.mxu0 0.0
  %1472 = vmatprep.subr.mxu0 0.0
  %1473 = vmatpush1.msra.mxu0 0.0
  %1474 = vmatprep.subr.mxu0 0.0
  %1475 = vmatpush1.msra.mxu0 0.0
  %1476 = vmatprep.subr.mxu0 0.0
  %1477 = vmatpush1.msra.mxu0 0.0
  %1478 = vmatprep.subr.mxu0 0.0
  %1479 = vmatpush1.msra.mxu0 0.0
  %1480 = vmatprep.subr.mxu0 0.0
  %1481 = vmatpush1.msra.mxu0 0.0
  %1482 = vmatprep.subr.mxu0 0.0
  %1483 = vmatpush1.msra.mxu0 0.0
  %1484 = vmatprep.subr.mxu0 0.0
  %1485 = vmatpush1.msra.mxu0 0.0
  %1486 = vmatprep.subr.mxu0 0.0
  %1487 = vmatpush1.msra.mxu0 0.0
  %1488 = vmatprep.subr.mxu0 0.0
  %v1489 = vand.u32 %v1378, 4294901760
  %v1490 = vsub.f32 %v1378, %v1489
  %v1491 = vand.u32 %v1490, 4294901760
  %v1492 = vsub.f32 %v1490, %v1491
  %v1493 = vand.u32 %v1492, 4294901760
  %1494 = vmatpush1.msra.mxu0 %v1493
  %1495 = vmatprep.subr.mxu0 0.0
  %1496 = vmatpush2.msra.mxu0 0.0
  %1497 = vmatprep.subr.mxu0 0.0
  %1498 = vmatpush2.msra.mxu0 0.0
  %1499 = vmatprep.subr.mxu0 0.0
  %1500 = vmatpush2.msra.mxu0 0.0
  %1501 = vmatprep.subr.mxu0 0.0
  %1502 = vmatpush2.msra.mxu0 0.0
  %1503 = vmatprep.subr.mxu0 0.0
  %1504 = vmatpush2.msra.mxu0 0.0
  %1505 = vmatprep.subr.mxu0 0.0
  %1506 = vmatpush2.msra.mxu0 0.0
  %1507 = vmatprep.subr.mxu0 0.0
  %1508 = vmatpush2.msra.mxu0 0.0
  %1509 = vmatprep.subr.mxu0 0.0
  %1510 = vmatpush2.msra.mxu0 0.0
  %1511 = vmatprep.subr.mxu0 0.0
  %1512 = vmatpush2.msra.mxu0 0.0
  %1513 = vmatprep.subr.mxu0 0.0
  %1514 = vmatpush2.msra.mxu0 0.0
  %1515 = vmatprep.subr.mxu0 0.0
  %1516 = vmatpush2.msra.mxu0 0.0
  %1517 = vmatprep.subr.mxu0 0.0
  %1518 = vmatpush2.msra.mxu0 0.0
  %1519 = vmatprep.subr.mxu0 0.0
  %1520 = vmatpush2.msra.mxu0 0.0
  %1521 = vmatprep.subr.mxu0 0.0
  %1522 = vmatpush2.msra.mxu0 0.0
  %1523 = vmatprep.subr.mxu0 0.0
  %1524 = vmatpush2.msra.mxu0 0.0
  %1525 = vmatprep.subr.mxu0 0.0
  %1526 = vmatpush2.msra.mxu0 0.0
  %1527 = vmatprep.mubr.f32.mxu0 0.0
  %v1528 = vand.u32 %v1380, 4294901760
  %1529 = vmatmul.mubr.f32.gmra.mxu0 %v1528
  %v1530 = vpop.f32.mrf.mxu0
  %v1531 = vadd.f32 %v1455, %v1530
  %v1532 = vpop.f32.mrf.mxu0
  %1533 = vdwg.mxu0
  %1534 = vmatprep.subr.mxu0 0.0
  %1535 = vmatpush1.msra.mxu0 0.0
  %1536 = vmatprep.subr.mxu0 0.0
  %1537 = vmatpush1.msra.mxu0 0.0
  %1538 = vmatprep.subr.mxu0 0.0
  %1539 = vmatpush1.msra.mxu0 0.0
  %1540 = vmatprep.subr.mxu0 0.0
  %1541 = vmatpush1.msra.mxu0 0.0
  %1542 = vmatprep.subr.mxu0 0.0
  %1543 = vmatpush1.msra.mxu0 0.0
  %1544 = vmatprep.subr.mxu0 0.0
  %1545 = vmatpush1.msra.mxu0 0.0
  %1546 = vmatprep.subr.mxu0 0.0
  %1547 = vmatpush1.msra.mxu0 0.0
  %1548 = vmatprep.subr.mxu0 0.0
  %1549 = vmatpush1.msra.mxu0 0.0
  %1550 = vmatprep.subr.mxu0 0.0
  %1551 = vmatpush1.msra.mxu0 0.0
  %1552 = vmatprep.subr.mxu0 0.0
  %1553 = vmatpush1.msra.mxu0 0.0
  %1554 = vmatprep.subr.mxu0 0.0
  %1555 = vmatpush1.msra.mxu0 0.0
  %1556 = vmatprep.subr.mxu0 0.0
  %1557 = vmatpush1.msra.mxu0 0.0
  %1558 = vmatprep.subr.mxu0 0.0
  %1559 = vmatpush1.msra.mxu0 0.0
  %1560 = vmatprep.subr.mxu0 0.0
  %1561 = vmatpush1.msra.mxu0 0.0
  %1562 = vmatprep.subr.mxu0 0.0
  %1563 = vmatpush1.msra.mxu0 0.0
  %1564 = vmatprep.subr.mxu0 0.0
  %v1565 = vand.u32 %v1378, 4294901760
  %v1566 = vsub.f32 %v1378, %v1565
  %1567 = vmatpush1.msra.mxu0 %v1566
  %1568 = vmatprep.subr.mxu0 0.0
  %1569 = vmatpush2.msra.mxu0 0.0
  %1570 = vmatprep.subr.mxu0 0.0
  %1571 = vmatpush2.msra.mxu0 0.0
  %1572 = vmatprep.subr.mxu0 0.0
  %1573 = vmatpush2.msra.mxu0 0.0
  %1574 = vmatprep.subr.mxu0 0.0
  %1575 = vmatpush2.msra.mxu0 0.0
  %1576 = vmatprep.subr.mxu0 0.0
  %1577 = vmatpush2.msra.mxu0 0.0
  %1578 = vmatprep.subr.mxu0 0.0
  %1579 = vmatpush2.msra.mxu0 0.0
  %1580 = vmatprep.subr.mxu0 0.0
  %1581 = vmatpush2.msra.mxu0 0.0
  %1582 = vmatprep.subr.mxu0 0.0
  %1583 = vmatpush2.msra.mxu0 0.0
  %1584 = vmatprep.subr.mxu0 0.0
  %1585 = vmatpush2.msra.mxu0 0.0
  %1586 = vmatprep.subr.mxu0 0.0
  %1587 = vmatpush2.msra.mxu0 0.0
  %1588 = vmatprep.subr.mxu0 0.0
  %1589 = vmatpush2.msra.mxu0 0.0
  %1590 = vmatprep.subr.mxu0 0.0
  %1591 = vmatpush2.msra.mxu0 0.0
  %1592 = vmatprep.subr.mxu0 0.0
  %1593 = vmatpush2.msra.mxu0 0.0
  %1594 = vmatprep.subr.mxu0 0.0
  %1595 = vmatpush2.msra.mxu0 0.0
  %1596 = vmatprep.subr.mxu0 0.0
  %1597 = vmatpush2.msra.mxu0 0.0
  %1598 = vmatprep.subr.mxu0 0.0
  %1599 = vmatpush2.msra.mxu0 0.0
  %1600 = vmatprep.mubr.f32.mxu0 0.0
  %v1601 = vand.u32 %v1380, 4294901760
  %v1602 = vsub.f32 %v1380, %v1601
  %1603 = vmatmul.mubr.f32.gmra.mxu0 %v1602
  %v1604 = vpop.f32.mrf.mxu0
  %v1605 = vadd.f32 %v1531, %v1604
  %v1606 = vpop.f32.mrf.mxu0
  %1607 = vdwg.mxu0
  %1608 = vmatprep.subr.mxu0 0.0
  %1609 = vmatpush1.msra.mxu0 0.0
  %1610 = vmatprep.subr.mxu0 0.0
  %1611 = vmatpush1.msra.mxu0 0.0
  %1612 = vmatprep.subr.mxu0 0.0
  %1613 = vmatpush1.msra.mxu0 0.0
  %1614 = vmatprep.subr.mxu0 0.0
  %1615 = vmatpush1.msra.mxu0 0.0
  %1616 = vmatprep.subr.mxu0 0.0
  %1617 = vmatpush1.msra.mxu0 0.0
  %1618 = vmatprep.subr.mxu0 0.0
  %1619 = vmatpush1.msra.mxu0 0.0
  %1620 = vmatprep.subr.mxu0 0.0
  %1621 = vmatpush1.msra.mxu0 0.0
  %1622 = vmatprep.subr.mxu0 0.0
  %1623 = vmatpush1.msra.mxu0 0.0
  %1624 = vmatprep.subr.mxu0 0.0
  %1625 = vmatpush1.msra.mxu0 0.0
  %1626 = vmatprep.subr.mxu0 0.0
  %1627 = vmatpush1.msra.mxu0 0.0
  %1628 = vmatprep.subr.mxu0 0.0
  %1629 = vmatpush1.msra.mxu0 0.0
  %1630 = vmatprep.subr.mxu0 0.0
  %1631 = vmatpush1.msra.mxu0 0.0
  %1632 = vmatprep.subr.mxu0 0.0
  %1633 = vmatpush1.msra.mxu0 0.0
  %1634 = vmatprep.subr.mxu0 0.0
  %1635 = vmatpush1.msra.mxu0 0.0
  %1636 = vmatprep.subr.mxu0 0.0
  %1637 = vmatpush1.msra.mxu0 0.0
  %1638 = vmatprep.subr.mxu0 0.0
  %v1639 = vand.u32 %v1378, 4294901760
  %1640 = vmatpush1.msra.mxu0 %v1639
  %1641 = vmatprep.subr.mxu0 0.0
  %1642 = vmatpush2.msra.mxu0 0.0
  %1643 = vmatprep.subr.mxu0 0.0
  %1644 = vmatpush2.msra.mxu0 0.0
  %1645 = vmatprep.subr.mxu0 0.0
  %1646 = vmatpush2.msra.mxu0 0.0
  %1647 = vmatprep.subr.mxu0 0.0
  %1648 = vmatpush2.msra.mxu0 0.0
  %1649 = vmatprep.subr.mxu0 0.0
  %1650 = vmatpush2.msra.mxu0 0.0
  %1651 = vmatprep.subr.mxu0 0.0
  %1652 = vmatpush2.msra.mxu0 0.0
  %1653 = vmatprep.subr.mxu0 0.0
  %1654 = vmatpush2.msra.mxu0 0.0
  %1655 = vmatprep.subr.mxu0 0.0
  %1656 = vmatpush2.msra.mxu0 0.0
  %1657 = vmatprep.subr.mxu0 0.0
  %1658 = vmatpush2.msra.mxu0 0.0
  %1659 = vmatprep.subr.mxu0 0.0
  %1660 = vmatpush2.msra.mxu0 0.0
  %1661 = vmatprep.subr.mxu0 0.0
  %1662 = vmatpush2.msra.mxu0 0.0
  %1663 = vmatprep.subr.mxu0 0.0
  %1664 = vmatpush2.msra.mxu0 0.0
  %1665 = vmatprep.subr.mxu0 0.0
  %1666 = vmatpush2.msra.mxu0 0.0
  %1667 = vmatprep.subr.mxu0 0.0
  %1668 = vmatpush2.msra.mxu0 0.0
  %1669 = vmatprep.subr.mxu0 0.0
  %1670 = vmatpush2.msra.mxu0 0.0
  %1671 = vmatprep.subr.mxu0 0.0
  %1672 = vmatpush2.msra.mxu0 0.0
  %1673 = vmatprep.mubr.f32.mxu0 0.0
  %v1674 = vand.u32 %v1380, 4294901760
  %v1675 = vsub.f32 %v1380, %v1674
  %v1676 = vand.u32 %v1675, 4294901760
  %1677 = vmatmul.mubr.f32.gmra.mxu0 %v1676
  %v1678 = vpop.f32.mrf.mxu0
  %v1679 = vadd.f32 %v1605, %v1678
  %v1680 = vpop.f32.mrf.mxu0
  %1681 = vdwg.mxu0
  %1682 = vmatprep.subr.mxu0 0.0
  %1683 = vmatpush1.msra.mxu0 0.0
  %1684 = vmatprep.subr.mxu0 0.0
  %1685 = vmatpush1.msra.mxu0 0.0
  %1686 = vmatprep.subr.mxu0 0.0
  %1687 = vmatpush1.msra.mxu0 0.0
  %1688 = vmatprep.subr.mxu0 0.0
  %1689 = vmatpush1.msra.mxu0 0.0
  %1690 = vmatprep.subr.mxu0 0.0
  %1691 = vmatpush1.msra.mxu0 0.0
  %1692 = vmatprep.subr.mxu0 0.0
  %1693 = vmatpush1.msra.mxu0 0.0
  %1694 = vmatprep.subr.mxu0 0.0
  %1695 = vmatpush1.msra.mxu0 0.0
  %1696 = vmatprep.subr.mxu0 0.0
  %1697 = vmatpush1.msra.mxu0 0.0
  %1698 = vmatprep.subr.mxu0 0.0
  %1699 = vmatpush1.msra.mxu0 0.0
  %1700 = vmatprep.subr.mxu0 0.0
  %1701 = vmatpush1.msra.mxu0 0.0
  %1702 = vmatprep.subr.mxu0 0.0
  %1703 = vmatpush1.msra.mxu0 0.0
  %1704 = vmatprep.subr.mxu0 0.0
  %1705 = vmatpush1.msra.mxu0 0.0
  %1706 = vmatprep.subr.mxu0 0.0
  %1707 = vmatpush1.msra.mxu0 0.0
  %1708 = vmatprep.subr.mxu0 0.0
  %1709 = vmatpush1.msra.mxu0 0.0
  %1710 = vmatprep.subr.mxu0 0.0
  %1711 = vmatpush1.msra.mxu0 0.0
  %1712 = vmatprep.subr.mxu0 0.0
  %v1713 = vand.u32 %v1378, 4294901760
  %v1714 = vsub.f32 %v1378, %v1713
  %v1715 = vand.u32 %v1714, 4294901760
  %1716 = vmatpush1.msra.mxu0 %v1715
  %1717 = vmatprep.subr.mxu0 0.0
  %1718 = vmatpush2.msra.mxu0 0.0
  %1719 = vmatprep.subr.mxu0 0.0
  %1720 = vmatpush2.msra.mxu0 0.0
  %1721 = vmatprep.subr.mxu0 0.0
  %1722 = vmatpush2.msra.mxu0 0.0
  %1723 = vmatprep.subr.mxu0 0.0
  %1724 = vmatpush2.msra.mxu0 0.0
  %1725 = vmatprep.subr.mxu0 0.0
  %1726 = vmatpush2.msra.mxu0 0.0
  %1727 = vmatprep.subr.mxu0 0.0
  %1728 = vmatpush2.msra.mxu0 0.0
  %1729 = vmatprep.subr.mxu0 0.0
  %1730 = vmatpush2.msra.mxu0 0.0
  %1731 = vmatprep.subr.mxu0 0.0
  %1732 = vmatpush2.msra.mxu0 0.0
  %1733 = vmatprep.subr.mxu0 0.0
  %1734 = vmatpush2.msra.mxu0 0.0
  %1735 = vmatprep.subr.mxu0 0.0
  %1736 = vmatpush2.msra.mxu0 0.0
  %1737 = vmatprep.subr.mxu0 0.0
  %1738 = vmatpush2.msra.mxu0 0.0
  %1739 = vmatprep.subr.mxu0 0.0
  %1740 = vmatpush2.msra.mxu0 0.0
  %1741 = vmatprep.subr.mxu0 0.0
  %1742 = vmatpush2.msra.mxu0 0.0
  %1743 = vmatprep.subr.mxu0 0.0
  %1744 = vmatpush2.msra.mxu0 0.0
  %1745 = vmatprep.subr.mxu0 0.0
  %1746 = vmatpush2.msra.mxu0 0.0
  %1747 = vmatprep.subr.mxu0 0.0
  %1748 = vmatpush2.msra.mxu0 0.0
  %1749 = vmatprep.mubr.f32.mxu0 0.0
  %v1750 = vand.u32 %v1380, 4294901760
  %1751 = vmatmul.mubr.f32.gmra.mxu0 %v1750
  %v1752 = vpop.f32.mrf.mxu0
  %v1753 = vadd.f32 %v1679, %v1752
  %v1754 = vpop.f32.mrf.mxu0
  %1755 = vdwg.mxu0
  %1756 = vmatprep.subr.mxu0 0.0
  %1757 = vmatpush1.msra.mxu0 0.0
  %1758 = vmatprep.subr.mxu0 0.0
  %1759 = vmatpush1.msra.mxu0 0.0
  %1760 = vmatprep.subr.mxu0 0.0
  %1761 = vmatpush1.msra.mxu0 0.0
  %1762 = vmatprep.subr.mxu0 0.0
  %1763 = vmatpush1.msra.mxu0 0.0
  %1764 = vmatprep.subr.mxu0 0.0
  %1765 = vmatpush1.msra.mxu0 0.0
  %1766 = vmatprep.subr.mxu0 0.0
  %1767 = vmatpush1.msra.mxu0 0.0
  %1768 = vmatprep.subr.mxu0 0.0
  %1769 = vmatpush1.msra.mxu0 0.0
  %1770 = vmatprep.subr.mxu0 0.0
  %1771 = vmatpush1.msra.mxu0 0.0
  %1772 = vmatprep.subr.mxu0 0.0
  %1773 = vmatpush1.msra.mxu0 0.0
  %1774 = vmatprep.subr.mxu0 0.0
  %1775 = vmatpush1.msra.mxu0 0.0
  %1776 = vmatprep.subr.mxu0 0.0
  %1777 = vmatpush1.msra.mxu0 0.0
  %1778 = vmatprep.subr.mxu0 0.0
  %1779 = vmatpush1.msra.mxu0 0.0
  %1780 = vmatprep.subr.mxu0 0.0
  %1781 = vmatpush1.msra.mxu0 0.0
  %1782 = vmatprep.subr.mxu0 0.0
  %1783 = vmatpush1.msra.mxu0 0.0
  %1784 = vmatprep.subr.mxu0 0.0
  %1785 = vmatpush1.msra.mxu0 0.0
  %1786 = vmatprep.subr.mxu0 0.0
  %v1787 = vand.u32 %v1378, 4294901760
  %1788 = vmatpush1.msra.mxu0 %v1787
  %1789 = vmatprep.subr.mxu0 0.0
  %1790 = vmatpush2.msra.mxu0 0.0
  %1791 = vmatprep.subr.mxu0 0.0
  %1792 = vmatpush2.msra.mxu0 0.0
  %1793 = vmatprep.subr.mxu0 0.0
  %1794 = vmatpush2.msra.mxu0 0.0
  %1795 = vmatprep.subr.mxu0 0.0
  %1796 = vmatpush2.msra.mxu0 0.0
  %1797 = vmatprep.subr.mxu0 0.0
  %1798 = vmatpush2.msra.mxu0 0.0
  %1799 = vmatprep.subr.mxu0 0.0
  %1800 = vmatpush2.msra.mxu0 0.0
  %1801 = vmatprep.subr.mxu0 0.0
  %1802 = vmatpush2.msra.mxu0 0.0
  %1803 = vmatprep.subr.mxu0 0.0
  %1804 = vmatpush2.msra.mxu0 0.0
  %1805 = vmatprep.subr.mxu0 0.0
  %1806 = vmatpush2.msra.mxu0 0.0
  %1807 = vmatprep.subr.mxu0 0.0
  %1808 = vmatpush2.msra.mxu0 0.0
  %1809 = vmatprep.subr.mxu0 0.0
  %1810 = vmatpush2.msra.mxu0 0.0
  %1811 = vmatprep.subr.mxu0 0.0
  %1812 = vmatpush2.msra.mxu0 0.0
  %1813 = vmatprep.subr.mxu0 0.0
  %1814 = vmatpush2.msra.mxu0 0.0
  %1815 = vmatprep.subr.mxu0 0.0
  %1816 = vmatpush2.msra.mxu0 0.0
  %1817 = vmatprep.subr.mxu0 0.0
  %1818 = vmatpush2.msra.mxu0 0.0
  %1819 = vmatprep.subr.mxu0 0.0
  %1820 = vmatpush2.msra.mxu0 0.0
  %1821 = vmatprep.mubr.f32.mxu0 0.0
  %v1822 = vand.u32 %v1380, 4294901760
  %1823 = vmatmul.mubr.f32.gmra.mxu0 %v1822
  %v1824 = vpop.f32.mrf.mxu0
  %v1825 = vadd.f32 %v1753, %v1824
  %v1826 = vpop.f32.mrf.mxu0
  %1827 = vdwg.mxu0
  %s1828 = scalar_lea.vmem %s2, 6
  %1829 = vst.msk [vmem:[%s1828] sm:$0x3] %vm463, %v1825
  %s1830 = scalar_lea.vmem %s0, 8
  %v1831 = vld [vmem:[%s1830] sm:$0x3]
  %s1832 = scalar_lea.vmem %s1, 32
  %v1833 = vld [vmem:[%s1832] sm:$0xff]
  %v1835 = vsel %vm13, %v1831, 0
  %1837 = vmatprep.subr.mxu0 0.0
  %1838 = vmatpush1.msra.mxu0 0.0
  %1839 = vmatprep.subr.mxu0 0.0
  %1840 = vmatpush1.msra.mxu0 0.0
  %1841 = vmatprep.subr.mxu0 0.0
  %1842 = vmatpush1.msra.mxu0 0.0
  %1843 = vmatprep.subr.mxu0 0.0
  %1844 = vmatpush1.msra.mxu0 0.0
  %1845 = vmatprep.subr.mxu0 0.0
  %1846 = vmatpush1.msra.mxu0 0.0
  %1847 = vmatprep.subr.mxu0 0.0
  %1848 = vmatpush1.msra.mxu0 0.0
  %1849 = vmatprep.subr.mxu0 0.0
  %1850 = vmatpush1.msra.mxu0 0.0
  %1851 = vmatprep.subr.mxu0 0.0
  %1852 = vmatpush1.msra.mxu0 0.0
  %1853 = vmatprep.subr.mxu0 0.0
  %1854 = vmatpush1.msra.mxu0 0.0
  %1855 = vmatprep.subr.mxu0 0.0
  %1856 = vmatpush1.msra.mxu0 0.0
  %1857 = vmatprep.subr.mxu0 0.0
  %1858 = vmatpush1.msra.mxu0 0.0
  %1859 = vmatprep.subr.mxu0 0.0
  %1860 = vmatpush1.msra.mxu0 0.0
  %1861 = vmatprep.subr.mxu0 0.0
  %1862 = vmatpush1.msra.mxu0 0.0
  %1863 = vmatprep.subr.mxu0 0.0
  %1864 = vmatpush1.msra.mxu0 0.0
  %1865 = vmatprep.subr.mxu0 0.0
  %1866 = vmatpush1.msra.mxu0 0.0
  %1867 = vmatprep.subr.mxu0 0.0
  %v1868 = vand.u32 %v1833, 4294901760
  %1869 = vmatpush1.msra.mxu0 %v1868
  %1870 = vmatprep.subr.mxu0 0.0
  %1871 = vmatpush2.msra.mxu0 0.0
  %1872 = vmatprep.subr.mxu0 0.0
  %1873 = vmatpush2.msra.mxu0 0.0
  %1874 = vmatprep.subr.mxu0 0.0
  %1875 = vmatpush2.msra.mxu0 0.0
  %1876 = vmatprep.subr.mxu0 0.0
  %1877 = vmatpush2.msra.mxu0 0.0
  %1878 = vmatprep.subr.mxu0 0.0
  %1879 = vmatpush2.msra.mxu0 0.0
  %1880 = vmatprep.subr.mxu0 0.0
  %1881 = vmatpush2.msra.mxu0 0.0
  %1882 = vmatprep.subr.mxu0 0.0
  %1883 = vmatpush2.msra.mxu0 0.0
  %1884 = vmatprep.subr.mxu0 0.0
  %1885 = vmatpush2.msra.mxu0 0.0
  %1886 = vmatprep.subr.mxu0 0.0
  %1887 = vmatpush2.msra.mxu0 0.0
  %1888 = vmatprep.subr.mxu0 0.0
  %1889 = vmatpush2.msra.mxu0 0.0
  %1890 = vmatprep.subr.mxu0 0.0
  %1891 = vmatpush2.msra.mxu0 0.0
  %1892 = vmatprep.subr.mxu0 0.0
  %1893 = vmatpush2.msra.mxu0 0.0
  %1894 = vmatprep.subr.mxu0 0.0
  %1895 = vmatpush2.msra.mxu0 0.0
  %1896 = vmatprep.subr.mxu0 0.0
  %1897 = vmatpush2.msra.mxu0 0.0
  %1898 = vmatprep.subr.mxu0 0.0
  %1899 = vmatpush2.msra.mxu0 0.0
  %1900 = vmatprep.subr.mxu0 0.0
  %1901 = vmatpush2.msra.mxu0 0.0
  %1902 = vmatprep.mubr.f32.mxu0 0.0
  %v1903 = vand.u32 %v1835, 4294901760
  %v1904 = vsub.f32 %v1835, %v1903
  %v1905 = vand.u32 %v1904, 4294901760
  %v1906 = vsub.f32 %v1904, %v1905
  %v1907 = vand.u32 %v1906, 4294901760
  %1908 = vmatmul.mubr.f32.gmra.mxu0 %v1907
  %v1909 = vpop.f32.mrf.mxu0
  %v1910 = vadd.f32 0.0, %v1909
  %v1911 = vpop.f32.mrf.mxu0
  %1912 = vdwg.mxu0
  %1913 = vmatprep.subr.mxu0 0.0
  %1914 = vmatpush1.msra.mxu0 0.0
  %1915 = vmatprep.subr.mxu0 0.0
  %1916 = vmatpush1.msra.mxu0 0.0
  %1917 = vmatprep.subr.mxu0 0.0
  %1918 = vmatpush1.msra.mxu0 0.0
  %1919 = vmatprep.subr.mxu0 0.0
  %1920 = vmatpush1.msra.mxu0 0.0
  %1921 = vmatprep.subr.mxu0 0.0
  %1922 = vmatpush1.msra.mxu0 0.0
  %1923 = vmatprep.subr.mxu0 0.0
  %1924 = vmatpush1.msra.mxu0 0.0
  %1925 = vmatprep.subr.mxu0 0.0
  %1926 = vmatpush1.msra.mxu0 0.0
  %1927 = vmatprep.subr.mxu0 0.0
  %1928 = vmatpush1.msra.mxu0 0.0
  %1929 = vmatprep.subr.mxu0 0.0
  %1930 = vmatpush1.msra.mxu0 0.0
  %1931 = vmatprep.subr.mxu0 0.0
  %1932 = vmatpush1.msra.mxu0 0.0
  %1933 = vmatprep.subr.mxu0 0.0
  %1934 = vmatpush1.msra.mxu0 0.0
  %1935 = vmatprep.subr.mxu0 0.0
  %1936 = vmatpush1.msra.mxu0 0.0
  %1937 = vmatprep.subr.mxu0 0.0
  %1938 = vmatpush1.msra.mxu0 0.0
  %1939 = vmatprep.subr.mxu0 0.0
  %1940 = vmatpush1.msra.mxu0 0.0
  %1941 = vmatprep.subr.mxu0 0.0
  %1942 = vmatpush1.msra.mxu0 0.0
  %1943 = vmatprep.subr.mxu0 0.0
  %v1944 = vand.u32 %v1833, 4294901760
  %v1945 = vsub.f32 %v1833, %v1944
  %v1946 = vand.u32 %v1945, 4294901760
  %v1947 = vsub.f32 %v1945, %v1946
  %v1948 = vand.u32 %v1947, 4294901760
  %1949 = vmatpush1.msra.mxu0 %v1948
  %1950 = vmatprep.subr.mxu0 0.0
  %1951 = vmatpush2.msra.mxu0 0.0
  %1952 = vmatprep.subr.mxu0 0.0
  %1953 = vmatpush2.msra.mxu0 0.0
  %1954 = vmatprep.subr.mxu0 0.0
  %1955 = vmatpush2.msra.mxu0 0.0
  %1956 = vmatprep.subr.mxu0 0.0
  %1957 = vmatpush2.msra.mxu0 0.0
  %1958 = vmatprep.subr.mxu0 0.0
  %1959 = vmatpush2.msra.mxu0 0.0
  %1960 = vmatprep.subr.mxu0 0.0
  %1961 = vmatpush2.msra.mxu0 0.0
  %1962 = vmatprep.subr.mxu0 0.0
  %1963 = vmatpush2.msra.mxu0 0.0
  %1964 = vmatprep.subr.mxu0 0.0
  %1965 = vmatpush2.msra.mxu0 0.0
  %1966 = vmatprep.subr.mxu0 0.0
  %1967 = vmatpush2.msra.mxu0 0.0
  %1968 = vmatprep.subr.mxu0 0.0
  %1969 = vmatpush2.msra.mxu0 0.0
  %1970 = vmatprep.subr.mxu0 0.0
  %1971 = vmatpush2.msra.mxu0 0.0
  %1972 = vmatprep.subr.mxu0 0.0
  %1973 = vmatpush2.msra.mxu0 0.0
  %1974 = vmatprep.subr.mxu0 0.0
  %1975 = vmatpush2.msra.mxu0 0.0
  %1976 = vmatprep.subr.mxu0 0.0
  %1977 = vmatpush2.msra.mxu0 0.0
  %1978 = vmatprep.subr.mxu0 0.0
  %1979 = vmatpush2.msra.mxu0 0.0
  %1980 = vmatprep.subr.mxu0 0.0
  %1981 = vmatpush2.msra.mxu0 0.0
  %1982 = vmatprep.mubr.f32.mxu0 0.0
  %v1983 = vand.u32 %v1835, 4294901760
  %1984 = vmatmul.mubr.f32.gmra.mxu0 %v1983
  %v1985 = vpop.f32.mrf.mxu0
  %v1986 = vadd.f32 %v1910, %v1985
  %v1987 = vpop.f32.mrf.mxu0
  %1988 = vdwg.mxu0
  %1989 = vmatprep.subr.mxu0 0.0
  %1990 = vmatpush1.msra.mxu0 0.0
  %1991 = vmatprep.subr.mxu0 0.0
  %1992 = vmatpush1.msra.mxu0 0.0
  %1993 = vmatprep.subr.mxu0 0.0
  %1994 = vmatpush1.msra.mxu0 0.0
  %1995 = vmatprep.subr.mxu0 0.0
  %1996 = vmatpush1.msra.mxu0 0.0
  %1997 = vmatprep.subr.mxu0 0.0
  %1998 = vmatpush1.msra.mxu0 0.0
  %1999 = vmatprep.subr.mxu0 0.0
  %2000 = vmatpush1.msra.mxu0 0.0
  %2001 = vmatprep.subr.mxu0 0.0
  %2002 = vmatpush1.msra.mxu0 0.0
  %2003 = vmatprep.subr.mxu0 0.0
  %2004 = vmatpush1.msra.mxu0 0.0
  %2005 = vmatprep.subr.mxu0 0.0
  %2006 = vmatpush1.msra.mxu0 0.0
  %2007 = vmatprep.subr.mxu0 0.0
  %2008 = vmatpush1.msra.mxu0 0.0
  %2009 = vmatprep.subr.mxu0 0.0
  %2010 = vmatpush1.msra.mxu0 0.0
  %2011 = vmatprep.subr.mxu0 0.0
  %2012 = vmatpush1.msra.mxu0 0.0
  %2013 = vmatprep.subr.mxu0 0.0
  %2014 = vmatpush1.msra.mxu0 0.0
  %2015 = vmatprep.subr.mxu0 0.0
  %2016 = vmatpush1.msra.mxu0 0.0
  %2017 = vmatprep.subr.mxu0 0.0
  %2018 = vmatpush1.msra.mxu0 0.0
  %2019 = vmatprep.subr.mxu0 0.0
  %v2020 = vand.u32 %v1833, 4294901760
  %v2021 = vsub.f32 %v1833, %v2020
  %2022 = vmatpush1.msra.mxu0 %v2021
  %2023 = vmatprep.subr.mxu0 0.0
  %2024 = vmatpush2.msra.mxu0 0.0
  %2025 = vmatprep.subr.mxu0 0.0
  %2026 = vmatpush2.msra.mxu0 0.0
  %2027 = vmatprep.subr.mxu0 0.0
  %2028 = vmatpush2.msra.mxu0 0.0
  %2029 = vmatprep.subr.mxu0 0.0
  %2030 = vmatpush2.msra.mxu0 0.0
  %2031 = vmatprep.subr.mxu0 0.0
  %2032 = vmatpush2.msra.mxu0 0.0
  %2033 = vmatprep.subr.mxu0 0.0
  %2034 = vmatpush2.msra.mxu0 0.0
  %2035 = vmatprep.subr.mxu0 0.0
  %2036 = vmatpush2.msra.mxu0 0.0
  %2037 = vmatprep.subr.mxu0 0.0
  %2038 = vmatpush2.msra.mxu0 0.0
  %2039 = vmatprep.subr.mxu0 0.0
  %2040 = vmatpush2.msra.mxu0 0.0
  %2041 = vmatprep.subr.mxu0 0.0
  %2042 = vmatpush2.msra.mxu0 0.0
  %2043 = vmatprep.subr.mxu0 0.0
  %2044 = vmatpush2.msra.mxu0 0.0
  %2045 = vmatprep.subr.mxu0 0.0
  %2046 = vmatpush2.msra.mxu0 0.0
  %2047 = vmatprep.subr.mxu0 0.0
  %2048 = vmatpush2.msra.mxu0 0.0
  %2049 = vmatprep.subr.mxu0 0.0
  %2050 = vmatpush2.msra.mxu0 0.0
  %2051 = vmatprep.subr.mxu0 0.0
  %2052 = vmatpush2.msra.mxu0 0.0
  %2053 = vmatprep.subr.mxu0 0.0
  %2054 = vmatpush2.msra.mxu0 0.0
  %2055 = vmatprep.mubr.f32.mxu0 0.0
  %v2056 = vand.u32 %v1835, 4294901760
  %v2057 = vsub.f32 %v1835, %v2056
  %2058 = vmatmul.mubr.f32.gmra.mxu0 %v2057
  %v2059 = vpop.f32.mrf.mxu0
  %v2060 = vadd.f32 %v1986, %v2059
  %v2061 = vpop.f32.mrf.mxu0
  %2062 = vdwg.mxu0
  %2063 = vmatprep.subr.mxu0 0.0
  %2064 = vmatpush1.msra.mxu0 0.0
  %2065 = vmatprep.subr.mxu0 0.0
  %2066 = vmatpush1.msra.mxu0 0.0
  %2067 = vmatprep.subr.mxu0 0.0
  %2068 = vmatpush1.msra.mxu0 0.0
  %2069 = vmatprep.subr.mxu0 0.0
  %2070 = vmatpush1.msra.mxu0 0.0
  %2071 = vmatprep.subr.mxu0 0.0
  %2072 = vmatpush1.msra.mxu0 0.0
  %2073 = vmatprep.subr.mxu0 0.0
  %2074 = vmatpush1.msra.mxu0 0.0
  %2075 = vmatprep.subr.mxu0 0.0
  %2076 = vmatpush1.msra.mxu0 0.0
  %2077 = vmatprep.subr.mxu0 0.0
  %2078 = vmatpush1.msra.mxu0 0.0
  %2079 = vmatprep.subr.mxu0 0.0
  %2080 = vmatpush1.msra.mxu0 0.0
  %2081 = vmatprep.subr.mxu0 0.0
  %2082 = vmatpush1.msra.mxu0 0.0
  %2083 = vmatprep.subr.mxu0 0.0
  %2084 = vmatpush1.msra.mxu0 0.0
  %2085 = vmatprep.subr.mxu0 0.0
  %2086 = vmatpush1.msra.mxu0 0.0
  %2087 = vmatprep.subr.mxu0 0.0
  %2088 = vmatpush1.msra.mxu0 0.0
  %2089 = vmatprep.subr.mxu0 0.0
  %2090 = vmatpush1.msra.mxu0 0.0
  %2091 = vmatprep.subr.mxu0 0.0
  %2092 = vmatpush1.msra.mxu0 0.0
  %2093 = vmatprep.subr.mxu0 0.0
  %v2094 = vand.u32 %v1833, 4294901760
  %2095 = vmatpush1.msra.mxu0 %v2094
  %2096 = vmatprep.subr.mxu0 0.0
  %2097 = vmatpush2.msra.mxu0 0.0
  %2098 = vmatprep.subr.mxu0 0.0
  %2099 = vmatpush2.msra.mxu0 0.0
  %2100 = vmatprep.subr.mxu0 0.0
  %2101 = vmatpush2.msra.mxu0 0.0
  %2102 = vmatprep.subr.mxu0 0.0
  %2103 = vmatpush2.msra.mxu0 0.0
  %2104 = vmatprep.subr.mxu0 0.0
  %2105 = vmatpush2.msra.mxu0 0.0
  %2106 = vmatprep.subr.mxu0 0.0
  %2107 = vmatpush2.msra.mxu0 0.0
  %2108 = vmatprep.subr.mxu0 0.0
  %2109 = vmatpush2.msra.mxu0 0.0
  %2110 = vmatprep.subr.mxu0 0.0
  %2111 = vmatpush2.msra.mxu0 0.0
  %2112 = vmatprep.subr.mxu0 0.0
  %2113 = vmatpush2.msra.mxu0 0.0
  %2114 = vmatprep.subr.mxu0 0.0
  %2115 = vmatpush2.msra.mxu0 0.0
  %2116 = vmatprep.subr.mxu0 0.0
  %2117 = vmatpush2.msra.mxu0 0.0
  %2118 = vmatprep.subr.mxu0 0.0
  %2119 = vmatpush2.msra.mxu0 0.0
  %2120 = vmatprep.subr.mxu0 0.0
  %2121 = vmatpush2.msra.mxu0 0.0
  %2122 = vmatprep.subr.mxu0 0.0
  %2123 = vmatpush2.msra.mxu0 0.0
  %2124 = vmatprep.subr.mxu0 0.0
  %2125 = vmatpush2.msra.mxu0 0.0
  %2126 = vmatprep.subr.mxu0 0.0
  %2127 = vmatpush2.msra.mxu0 0.0
  %2128 = vmatprep.mubr.f32.mxu0 0.0
  %v2129 = vand.u32 %v1835, 4294901760
  %v2130 = vsub.f32 %v1835, %v2129
  %v2131 = vand.u32 %v2130, 4294901760
  %2132 = vmatmul.mubr.f32.gmra.mxu0 %v2131
  %v2133 = vpop.f32.mrf.mxu0
  %v2134 = vadd.f32 %v2060, %v2133
  %v2135 = vpop.f32.mrf.mxu0
  %2136 = vdwg.mxu0
  %2137 = vmatprep.subr.mxu0 0.0
  %2138 = vmatpush1.msra.mxu0 0.0
  %2139 = vmatprep.subr.mxu0 0.0
  %2140 = vmatpush1.msra.mxu0 0.0
  %2141 = vmatprep.subr.mxu0 0.0
  %2142 = vmatpush1.msra.mxu0 0.0
  %2143 = vmatprep.subr.mxu0 0.0
  %2144 = vmatpush1.msra.mxu0 0.0
  %2145 = vmatprep.subr.mxu0 0.0
  %2146 = vmatpush1.msra.mxu0 0.0
  %2147 = vmatprep.subr.mxu0 0.0
  %2148 = vmatpush1.msra.mxu0 0.0
  %2149 = vmatprep.subr.mxu0 0.0
  %2150 = vmatpush1.msra.mxu0 0.0
  %2151 = vmatprep.subr.mxu0 0.0
  %2152 = vmatpush1.msra.mxu0 0.0
  %2153 = vmatprep.subr.mxu0 0.0
  %2154 = vmatpush1.msra.mxu0 0.0
  %2155 = vmatprep.subr.mxu0 0.0
  %2156 = vmatpush1.msra.mxu0 0.0
  %2157 = vmatprep.subr.mxu0 0.0
  %2158 = vmatpush1.msra.mxu0 0.0
  %2159 = vmatprep.subr.mxu0 0.0
  %2160 = vmatpush1.msra.mxu0 0.0
  %2161 = vmatprep.subr.mxu0 0.0
  %2162 = vmatpush1.msra.mxu0 0.0
  %2163 = vmatprep.subr.mxu0 0.0
  %2164 = vmatpush1.msra.mxu0 0.0
  %2165 = vmatprep.subr.mxu0 0.0
  %2166 = vmatpush1.msra.mxu0 0.0
  %2167 = vmatprep.subr.mxu0 0.0
  %v2168 = vand.u32 %v1833, 4294901760
  %v2169 = vsub.f32 %v1833, %v2168
  %v2170 = vand.u32 %v2169, 4294901760
  %2171 = vmatpush1.msra.mxu0 %v2170
  %2172 = vmatprep.subr.mxu0 0.0
  %2173 = vmatpush2.msra.mxu0 0.0
  %2174 = vmatprep.subr.mxu0 0.0
  %2175 = vmatpush2.msra.mxu0 0.0
  %2176 = vmatprep.subr.mxu0 0.0
  %2177 = vmatpush2.msra.mxu0 0.0
  %2178 = vmatprep.subr.mxu0 0.0
  %2179 = vmatpush2.msra.mxu0 0.0
  %2180 = vmatprep.subr.mxu0 0.0
  %2181 = vmatpush2.msra.mxu0 0.0
  %2182 = vmatprep.subr.mxu0 0.0
  %2183 = vmatpush2.msra.mxu0 0.0
  %2184 = vmatprep.subr.mxu0 0.0
  %2185 = vmatpush2.msra.mxu0 0.0
  %2186 = vmatprep.subr.mxu0 0.0
  %2187 = vmatpush2.msra.mxu0 0.0
  %2188 = vmatprep.subr.mxu0 0.0
  %2189 = vmatpush2.msra.mxu0 0.0
  %2190 = vmatprep.subr.mxu0 0.0
  %2191 = vmatpush2.msra.mxu0 0.0
  %2192 = vmatprep.subr.mxu0 0.0
  %2193 = vmatpush2.msra.mxu0 0.0
  %2194 = vmatprep.subr.mxu0 0.0
  %2195 = vmatpush2.msra.mxu0 0.0
  %2196 = vmatprep.subr.mxu0 0.0
  %2197 = vmatpush2.msra.mxu0 0.0
  %2198 = vmatprep.subr.mxu0 0.0
  %2199 = vmatpush2.msra.mxu0 0.0
  %2200 = vmatprep.subr.mxu0 0.0
  %2201 = vmatpush2.msra.mxu0 0.0
  %2202 = vmatprep.subr.mxu0 0.0
  %2203 = vmatpush2.msra.mxu0 0.0
  %2204 = vmatprep.mubr.f32.mxu0 0.0
  %v2205 = vand.u32 %v1835, 4294901760
  %2206 = vmatmul.mubr.f32.gmra.mxu0 %v2205
  %v2207 = vpop.f32.mrf.mxu0
  %v2208 = vadd.f32 %v2134, %v2207
  %v2209 = vpop.f32.mrf.mxu0
  %2210 = vdwg.mxu0
  %2211 = vmatprep.subr.mxu0 0.0
  %2212 = vmatpush1.msra.mxu0 0.0
  %2213 = vmatprep.subr.mxu0 0.0
  %2214 = vmatpush1.msra.mxu0 0.0
  %2215 = vmatprep.subr.mxu0 0.0
  %2216 = vmatpush1.msra.mxu0 0.0
  %2217 = vmatprep.subr.mxu0 0.0
  %2218 = vmatpush1.msra.mxu0 0.0
  %2219 = vmatprep.subr.mxu0 0.0
  %2220 = vmatpush1.msra.mxu0 0.0
  %2221 = vmatprep.subr.mxu0 0.0
  %2222 = vmatpush1.msra.mxu0 0.0
  %2223 = vmatprep.subr.mxu0 0.0
  %2224 = vmatpush1.msra.mxu0 0.0
  %2225 = vmatprep.subr.mxu0 0.0
  %2226 = vmatpush1.msra.mxu0 0.0
  %2227 = vmatprep.subr.mxu0 0.0
  %2228 = vmatpush1.msra.mxu0 0.0
  %2229 = vmatprep.subr.mxu0 0.0
  %2230 = vmatpush1.msra.mxu0 0.0
  %2231 = vmatprep.subr.mxu0 0.0
  %2232 = vmatpush1.msra.mxu0 0.0
  %2233 = vmatprep.subr.mxu0 0.0
  %2234 = vmatpush1.msra.mxu0 0.0
  %2235 = vmatprep.subr.mxu0 0.0
  %2236 = vmatpush1.msra.mxu0 0.0
  %2237 = vmatprep.subr.mxu0 0.0
  %2238 = vmatpush1.msra.mxu0 0.0
  %2239 = vmatprep.subr.mxu0 0.0
  %2240 = vmatpush1.msra.mxu0 0.0
  %2241 = vmatprep.subr.mxu0 0.0
  %v2242 = vand.u32 %v1833, 4294901760
  %2243 = vmatpush1.msra.mxu0 %v2242
  %2244 = vmatprep.subr.mxu0 0.0
  %2245 = vmatpush2.msra.mxu0 0.0
  %2246 = vmatprep.subr.mxu0 0.0
  %2247 = vmatpush2.msra.mxu0 0.0
  %2248 = vmatprep.subr.mxu0 0.0
  %2249 = vmatpush2.msra.mxu0 0.0
  %2250 = vmatprep.subr.mxu0 0.0
  %2251 = vmatpush2.msra.mxu0 0.0
  %2252 = vmatprep.subr.mxu0 0.0
  %2253 = vmatpush2.msra.mxu0 0.0
  %2254 = vmatprep.subr.mxu0 0.0
  %2255 = vmatpush2.msra.mxu0 0.0
  %2256 = vmatprep.subr.mxu0 0.0
  %2257 = vmatpush2.msra.mxu0 0.0
  %2258 = vmatprep.subr.mxu0 0.0
  %2259 = vmatpush2.msra.mxu0 0.0
  %2260 = vmatprep.subr.mxu0 0.0
  %2261 = vmatpush2.msra.mxu0 0.0
  %2262 = vmatprep.subr.mxu0 0.0
  %2263 = vmatpush2.msra.mxu0 0.0
  %2264 = vmatprep.subr.mxu0 0.0
  %2265 = vmatpush2.msra.mxu0 0.0
  %2266 = vmatprep.subr.mxu0 0.0
  %2267 = vmatpush2.msra.mxu0 0.0
  %2268 = vmatprep.subr.mxu0 0.0
  %2269 = vmatpush2.msra.mxu0 0.0
  %2270 = vmatprep.subr.mxu0 0.0
  %2271 = vmatpush2.msra.mxu0 0.0
  %2272 = vmatprep.subr.mxu0 0.0
  %2273 = vmatpush2.msra.mxu0 0.0
  %2274 = vmatprep.subr.mxu0 0.0
  %2275 = vmatpush2.msra.mxu0 0.0
  %2276 = vmatprep.mubr.f32.mxu0 0.0
  %v2277 = vand.u32 %v1835, 4294901760
  %2278 = vmatmul.mubr.f32.gmra.mxu0 %v2277
  %v2279 = vpop.f32.mrf.mxu0
  %v2280 = vadd.f32 %v2208, %v2279
  %v2281 = vpop.f32.mrf.mxu0
  %2282 = vdwg.mxu0
  %s2283 = scalar_lea.vmem %s2, 8
  %2284 = vst.msk [vmem:[%s2283] sm:$0x3] %vm463, %v2280
  // Predicated region
  $region10: #{spectral_conv1d.1} parent=0 // pred_check
    _
  $region11: #{spectral_conv1d.1} parent=0 // pred_check_branch
    %2286 = sbr.rel (0) target = $region13
  $region12: #{spectral_conv1d.1} parent=0 // pred_region
    _
  $region13: #{spectral_conv1d.1} parent=0 // pred_fallthru
    _
  // Predicated region
  $region14: #{spectral_conv1d.1} parent=0 // pred_check
    _
  $region15: #{spectral_conv1d.1} parent=0 // pred_check_branch
    %2288 = sbr.rel (0) target = $region17
  $region16: #{spectral_conv1d.1} parent=0 // pred_region
    _
  $region17: #{spectral_conv1d.1} parent=0 // pred_fallthru
    _

</llo_original>
